<compile_context>
chip_gen: v7x
topology: tpu7x:2x2x1
jax: 0.10.0
libtpu: 0.0.40
codegen_flags: <defaults>
</compile_context>

<pallas_src>
import functools

import jax
import jax.numpy as jnp
from jax import lax
from jax.experimental import pallas as pl
from jax.experimental.pallas import tpu as pltpu


def _shift_rows_down(t, rows_per_image):
    """result[i] = t[i-1]; zero at the first row of every image in the flat batch."""
    m, n = t.shape
    shifted = jnp.concatenate([jnp.zeros((1, n), t.dtype), t[:m - 1, :]], axis=0)
    row = lax.broadcasted_iota(jnp.int32, (m, n), 0)
    return jnp.where(row % rows_per_image == 0, 0.0, shifted)


def _shift_rows_up(t, rows_per_image):
    """result[i] = t[i+1]; zero at the last row of every image in the flat batch."""
    m, n = t.shape
    shifted = jnp.concatenate([t[1:, :], jnp.zeros((1, n), t.dtype)], axis=0)
    row = lax.broadcasted_iota(jnp.int32, (m, n), 0)
    return jnp.where(row % rows_per_image == rows_per_image - 1, 0.0, shifted)


def resblock_d3_kernel(x_ref,            # (Nb, H, W*Cin)          lane-packed input
                       w1_ref, b1_ref,   # (W*Cin, W*Cout), (1, W*Cout)   block-diag 1x1 (BN folded)
                       wa_ref, ba_ref,   # (3, W*Cin, W*Cout), (1, W*Cout) banded conv3x3 #1 (BN folded)
                       wb_ref, bb_ref,   # (3, W*Cout, W*Cout), (1, W*Cout) banded conv3x3 #2 (BN folded)
                       out_ref):         # (Nb, H, W*Cout)          lane-packed output
    nb, h, wcin = x_ref.shape
    wcout = out_ref.shape[2]
    f32 = jnp.float32

    x = x_ref[...].reshape(nb * h, wcin)          # (M, W*Cin), M = Nb*H
    xm = x.astype(w1_ref.dtype)                   # MXU operand dtype (f32 or bf16)

    # ---- shortcut branch: 1x1 conv (+folded BN) == one block-diagonal matmul ----
    v1 = jnp.dot(xm, w1_ref[...], preferred_element_type=f32) + b1_ref[...]

    # ---- main branch conv3x3 #1: three banded matmuls (kx + horiz pad in the
    #      weights), ky taps as +-1-row shifts of the results ----
    t0 = jnp.dot(xm, wa_ref[0], preferred_element_type=f32)
    t1 = jnp.dot(xm, wa_ref[1], preferred_element_type=f32)
    t2 = jnp.dot(xm, wa_ref[2], preferred_element_type=f32)
    a = _shift_rows_down(t0, h) + t1 + _shift_rows_up(t2, h) + ba_ref[...]
    a = jnp.maximum(a, 0.0)                       # ReLU; Dropout = identity (eval)

    # ---- main branch conv3x3 #2 ----
    am = a.astype(wb_ref.dtype)
    u0 = jnp.dot(am, wb_ref[0], preferred_element_type=f32)
    u1 = jnp.dot(am, wb_ref[1], preferred_element_type=f32)
    u2 = jnp.dot(am, wb_ref[2], preferred_element_type=f32)
    b = _shift_rows_down(u0, h) + u1 + _shift_rows_up(u2, h) + bb_ref[...]
    b = jnp.maximum(b, 0.0)                       # ReLU; Dropout = identity (eval)

    # ---- residual add + final ReLU; single full-width lane-dense store ----
    out_ref[...] = jnp.maximum(b + v1, 0.0).reshape(nb, h, wcout)


def _fold_bn_into_conv(w, b, gamma, beta, mean, var, eps=1e-5):
    """Fold eval-mode BatchNorm into the preceding conv: w' = w*s, b' = b*s + o."""
    scale = gamma / jnp.sqrt(var + eps)                     # (Cout,)
    return w * scale, b * scale + (beta - mean * scale)


def _block_diag_1x1(w1, W):
    """(Cin, Cout) 1x1 conv -> (W*Cin, W*Cout) block-diagonal lane-packed weight."""
    return jnp.kron(jnp.eye(W, dtype=w1.dtype), w1)


def _banded_3x3(w_hwio, W):
    """(3,3,Ci,Co) conv -> (3, W*Ci, W*Co) per-ky banded lane-packed weights.

    Entry [(w+kx-1)*Ci+ci, w*Co+co] of slice ky is w_hwio[ky,kx,ci,co]; pixel
    indices outside [0, W) are dropped, which realizes the horizontal zero pad.
    """
    mats = []
    for ky in range(3):
        m = 0.0
        for kx in range(3):
            # shift[p, w] = 1  iff  p == w + kx - 1
            shift = jnp.eye(W, k=1 - kx, dtype=w_hwio.dtype)
            m = m + jnp.kron(shift, w_hwio[ky, kx])
        mats.append(m)
    return jnp.stack(mats)


@functools.partial(jax.jit, static_argnames=("stride", "images_per_step", "mxu_dtype"))
def resblock_d3_forward(x_nchw, params, stride=1, images_per_step=1,
                        mxu_dtype=jnp.float32):
    assert stride == 1, "Pallas kernel implemented for stride=1 (module default)"
    x = jnp.transpose(x_nchw, (0, 2, 3, 1)).astype(jnp.float32)   # NCHW -> NHWC
    N, H, W, Cin = x.shape
    Cout = params["w1"].shape[-1]
    nb = images_per_step
    assert N % nb == 0, "batch must be divisible by images_per_step"

    # Fold BatchNorm + conv bias into the conv weights (trace time, free at runtime).
    w1, b1 = _fold_bn_into_conv(params["w1"], params["b1"],
                                params["bn1_gamma"], params["bn1_beta"],
                                params["bn1_mean"], params["bn1_var"])
    wa, ba = _fold_bn_into_conv(params["wa"], params["ba"],
                                params["bna_gamma"], params["bna_beta"],
                                params["bna_mean"], params["bna_var"])
    wb, bb = _fold_bn_into_conv(params["wb"], params["bb"],
                                params["bnb_gamma"], params["bnb_beta"],
                                params["bnb_mean"], params["bnb_var"])

    # Lane-packed operands (all lane dims become W*C; 128 lanes at the test shape).
    x_packed = x.reshape(N, H, W * Cin)
    w1b = _block_diag_1x1(w1, W).astype(mxu_dtype)           # (W*Cin,  W*Cout)
    wab = _banded_3x3(wa, W).astype(mxu_dtype)               # (3, W*Cin,  W*Cout)
    wbb = _banded_3x3(wb, W).astype(mxu_dtype)               # (3, W*Cout, W*Cout)
    b1t = jnp.tile(b1, W).reshape(1, W * Cout).astype(jnp.float32)
    bat = jnp.tile(ba, W).reshape(1, W * Cout).astype(jnp.float32)
    bbt = jnp.tile(bb, W).reshape(1, W * Cout).astype(jnp.float32)

    # Full-array weight/bias blocks with constant index maps -> DMA'd once.
    full = lambda arr: pl.BlockSpec(arr.shape, lambda n, _nd=arr.ndim: (0,) * _nd)

    # VMEM budget derived from the actual shapes (double-buffered activation
    # blocks + resident weights), clamped to a range safe on v5e/v6e/v7x.
    itemsize = jnp.dtype(mxu_dtype).itemsize
    blk_bytes = nb * H * W * (Cin + Cout) * 4
    w_bytes = (w1b.size + wab.size + wbb.size) * itemsize + 3 * W * Cout * 4
    vmem_limit = int(min(max(2 * (blk_bytes + w_bytes) + (1 << 20), 16 << 20), 64 << 20))

    out_packed = pl.pallas_call(
        resblock_d3_kernel,
        out_shape=jax.ShapeDtypeStruct((N, H, W * Cout), jnp.float32),
        grid=(N // nb,),
        in_specs=[
            pl.BlockSpec((nb, H, W * Cin), lambda n: (n, 0, 0)),   # nb images / step
            full(w1b), full(b1t), full(wab), full(bat), full(wbb), full(bbt),
        ],
        out_specs=pl.BlockSpec((nb, H, W * Cout), lambda n: (n, 0, 0)),
        compiler_params=pltpu.CompilerParams(
            dimension_semantics=("parallel",),       # megacore-shard the batch grid
            vmem_limit_bytes=vmem_limit,
        ),
    )(x_packed, w1b, b1t, wab, bat, wbb, bbt)

    out = out_packed.reshape(N, H, W, Cout)
    return jnp.transpose(out, (0, 3, 1, 2))                  # NHWC -> NCHW


def make_params(key, in_channels, out_channels):
    """Deterministic synthetic parameters (shapes per the module __init__)."""
    ks = jax.random.split(key, 18)
    u = lambda k, shape, s=0.3: jax.random.uniform(k, shape, jnp.float32, -s, s)
    p = {
        "w1": u(ks[0], (in_channels, out_channels)),          # 1x1 conv as (Cin, Cout)
        "b1": u(ks[1], (out_channels,)),
        "wa": u(ks[2], (3, 3, in_channels, out_channels)),    # HWIO
        "ba": u(ks[3], (out_channels,)),
        "wb": u(ks[4], (3, 3, out_channels, out_channels)),
        "bb": u(ks[5], (out_channels,)),
    }
    idx = 6
    for name in ("bn1", "bna", "bnb"):                        # distinct keys per BN
        p[name + "_gamma"] = 1.0 + u(ks[idx], (out_channels,), 0.1)
        p[name + "_beta"] = u(ks[idx + 1], (out_channels,), 0.1)
        p[name + "_mean"] = u(ks[idx + 2], (out_channels,), 0.1)
        p[name + "_var"] = 1.0 + u(ks[idx + 3], (out_channels,), 0.1)
        idx += 4
    return p


def reference_forward(x_nchw, params, eps=1e-5):
    """Pure-JAX reference (eval-mode semantics) for validation."""
    x = jnp.transpose(x_nchw, (0, 2, 3, 1)).astype(jnp.float32)

    def conv(h, w_hwio, b, pad):
        y = jax.lax.conv_general_dilated(
            h, w_hwio, window_strides=(1, 1), padding=pad,
            dimension_numbers=("NHWC", "HWIO", "NHWC"))
        return y + b.reshape(1, 1, 1, -1)

    def bn(h, g, bta, m, v):
        return (h - m) / jnp.sqrt(v + eps) * g + bta

    v1 = conv(x, params["w1"][None, None], params["b1"], "VALID")
    v1 = bn(v1, params["bn1_gamma"], params["bn1_beta"],
            params["bn1_mean"], params["bn1_var"])

    a = conv(x, params["wa"], params["ba"], [(1, 1), (1, 1)])
    a = jnp.maximum(bn(a, params["bna_gamma"], params["bna_beta"],
                       params["bna_mean"], params["bna_var"]), 0.0)
    b = conv(a, params["wb"], params["bb"], [(1, 1), (1, 1)])
    b = jnp.maximum(bn(b, params["bnb_gamma"], params["bnb_beta"],
                       params["bnb_mean"], params["bnb_var"]), 0.0)
    out = jnp.maximum(b + v1, 0.0)
    return jnp.transpose(out, (0, 3, 1, 2))


if __name__ == "__main__":
    key = jax.random.PRNGKey(0)
    k_x, k_p = jax.random.split(key)

    N, Cin, Cout, H, W = 2, 4, 8, 16, 16
    x = jax.random.normal(k_x, (N, Cin, H, W), jnp.float32)   # PyTorch NCHW input
    params = make_params(k_p, Cin, Cout)

    out = resblock_d3_forward(x, params, stride=1, images_per_step=1)
    out = jax.block_until_ready(out)

    ref = reference_forward(x, params)
    assert out.shape == (N, Cout, H, W), out.shape
    max_err = float(jnp.max(jnp.abs(out - ref)))
    assert jnp.allclose(out, ref, atol=1e-3, rtol=1e-3), max_err

    print("KERNEL_OK")
</pallas_src>

<mosaic_0001>
module attributes {stable_mosaic.version = 11 : i64} {
  func.func @resblock_d3_kernel(%arg0: i32, %arg1: memref<1x16x64xf32, #tpu.memory_space<vmem>>, %arg2: memref<64x128xf32, #tpu.memory_space<vmem>>, %arg3: memref<1x128xf32, #tpu.memory_space<vmem>>, %arg4: memref<3x64x128xf32, #tpu.memory_space<vmem>>, %arg5: memref<1x128xf32, #tpu.memory_space<vmem>>, %arg6: memref<3x128x128xf32, #tpu.memory_space<vmem>>, %arg7: memref<1x128xf32, #tpu.memory_space<vmem>>, %arg8: memref<1x16x128xf32, #tpu.memory_space<vmem>>) attributes {dimension_semantics = [#tpu.dimension_semantics<parallel>], iteration_bounds = array<i64: 2>, scalar_prefetch = 0 : i64, scratch_operands = 0 : i64, tpu.core_type = #tpu.core_type<tc>, window_params = [{transform_indices = @transform_0, window_bounds = array<i64: 1, 16, 64>}, {pipeline_mode = #tpu.pipeline_mode<synchronous>, transform_indices = @transform_1, window_bounds = array<i64: 64, 128>}, {pipeline_mode = #tpu.pipeline_mode<synchronous>, transform_indices = @transform_2, window_bounds = array<i64: 1, 128>}, {pipeline_mode = #tpu.pipeline_mode<synchronous>, transform_indices = @transform_3, window_bounds = array<i64: 3, 64, 128>}, {pipeline_mode = #tpu.pipeline_mode<synchronous>, transform_indices = @transform_4, window_bounds = array<i64: 1, 128>}, {pipeline_mode = #tpu.pipeline_mode<synchronous>, transform_indices = @transform_5, window_bounds = array<i64: 3, 128, 128>}, {pipeline_mode = #tpu.pipeline_mode<synchronous>, transform_indices = @transform_6, window_bounds = array<i64: 1, 128>}, {transform_indices = @transform_7, window_bounds = array<i64: 1, 16, 128>}]} {
    %c0 = arith.constant 0 : index
    %c0_0 = arith.constant 0 : index
    %c0_1 = arith.constant 0 : index
    %0 = vector.load %arg1[%c0, %c0_0, %c0_1] : memref<1x16x64xf32, #tpu.memory_space<vmem>>, vector<1x16x64xf32>
    %1 = vector.shape_cast %0 : vector<1x16x64xf32> to vector<16x64xf32>
    %c0_2 = arith.constant 0 : index
    %c0_3 = arith.constant 0 : index
    %2 = vector.load %arg2[%c0_2, %c0_3] : memref<64x128xf32, #tpu.memory_space<vmem>>, vector<64x128xf32>
    %cst = arith.constant dense<0.000000e+00> : vector<16x128xf32>
    %3 = tpu.matmul %1, %2, %cst {dimension_numbers = #tpu.dot_dimension_numbers<[1], [0], [0], [1], [0, 0, 1, 1], [], []>} : vector<16x64xf32>, vector<64x128xf32>, vector<16x128xf32> -> vector<16x128xf32>
    %c0_4 = arith.constant 0 : index
    %c0_5 = arith.constant 0 : index
    %4 = vector.load %arg3[%c0_4, %c0_5] : memref<1x128xf32, #tpu.memory_space<vmem>>, vector<1x128xf32>
    %5 = vector.broadcast %4 : vector<1x128xf32> to vector<16x128xf32>
    %6 = arith.addf %3, %5 : vector<16x128xf32>
    %c0_6 = arith.constant 0 : index
    %c0_7 = arith.constant 0 : index
    %c0_8 = arith.constant 0 : index
    %7 = vector.load %arg4[%c0_6, %c0_7, %c0_8] : memref<3x64x128xf32, #tpu.memory_space<vmem>>, vector<1x64x128xf32>
    %8 = vector.shape_cast %7 : vector<1x64x128xf32> to vector<64x128xf32>
    %cst_9 = arith.constant dense<0.000000e+00> : vector<16x128xf32>
    %9 = tpu.matmul %1, %8, %cst_9 {dimension_numbers = #tpu.dot_dimension_numbers<[1], [0], [0], [1], [0, 0, 1, 1], [], []>} : vector<16x64xf32>, vector<64x128xf32>, vector<16x128xf32> -> vector<16x128xf32>
    %c1 = arith.constant 1 : index
    %c0_10 = arith.constant 0 : index
    %c0_11 = arith.constant 0 : index
    %10 = vector.load %arg4[%c1, %c0_10, %c0_11] : memref<3x64x128xf32, #tpu.memory_space<vmem>>, vector<1x64x128xf32>
    %11 = vector.shape_cast %10 : vector<1x64x128xf32> to vector<64x128xf32>
    %cst_12 = arith.constant dense<0.000000e+00> : vector<16x128xf32>
    %12 = tpu.matmul %1, %11, %cst_12 {dimension_numbers = #tpu.dot_dimension_numbers<[1], [0], [0], [1], [0, 0, 1, 1], [], []>} : vector<16x64xf32>, vector<64x128xf32>, vector<16x128xf32> -> vector<16x128xf32>
    %c2 = arith.constant 2 : index
    %c0_13 = arith.constant 0 : index
    %c0_14 = arith.constant 0 : index
    %13 = vector.load %arg4[%c2, %c0_13, %c0_14] : memref<3x64x128xf32, #tpu.memory_space<vmem>>, vector<1x64x128xf32>
    %14 = vector.shape_cast %13 : vector<1x64x128xf32> to vector<64x128xf32>
    %cst_15 = arith.constant dense<0.000000e+00> : vector<16x128xf32>
    %15 = tpu.matmul %1, %14, %cst_15 {dimension_numbers = #tpu.dot_dimension_numbers<[1], [0], [0], [1], [0, 0, 1, 1], [], []>} : vector<16x64xf32>, vector<64x128xf32>, vector<16x128xf32> -> vector<16x128xf32>
    %cst_16 = arith.constant 0.000000e+00 : f32
    %16 = vector.broadcast %cst_16 : f32 to vector<1x128xf32>
    %17 = vector.extract_strided_slice %9 {offsets = [0, 0], sizes = [15, 128], strides = [1, 1]} : vector<16x128xf32> to vector<15x128xf32>
    %18 = tpu.concatenate %16, %17 in 0 : vector<1x128xf32>, vector<15x128xf32> -> vector<16x128xf32>
    %19 = tpu.iota {dimensions = array<i32: 0>} : vector<16x128xi32>
    %c16_i32 = arith.constant 16 : i32
    %c0_i32 = arith.constant 0 : i32
    %20 = arith.cmpi eq, %c16_i32, %c0_i32 : i32
    %c1_i32 = arith.constant 1 : i32
    %21 = arith.select %20, %c1_i32, %c16_i32 : i32
    %22 = vector.broadcast %21 : i32 to vector<16x128xi32>
    %23 = arith.remsi %19, %22 : vector<16x128xi32>
    %c0_i32_17 = arith.constant 0 : i32
    %24 = vector.broadcast %c0_i32_17 : i32 to vector<16x128xi32>
    %25 = arith.cmpi ne, %23, %24 : vector<16x128xi32>
    %c0_i32_18 = arith.constant 0 : i32
    %26 = vector.broadcast %c0_i32_18 : i32 to vector<16x128xi32>
    %27 = arith.cmpi slt, %23, %26 : vector<16x128xi32>
    %c0_i32_19 = arith.constant 0 : i32
    %28 = arith.cmpi slt, %21, %c0_i32_19 : i32
    %29 = vector.broadcast %28 : i1 to vector<16x128xi1>
    %30 = vector.broadcast %29 : vector<16x128xi1> to vector<16x128xi1>
    %31 = arith.xori %27, %30 : vector<16x128xi1>
    %32 = arith.andi %31, %25 : vector<16x128xi1>
    %33 = vector.broadcast %21 : i32 to vector<16x128xi32>
    %34 = arith.addi %23, %33 : vector<16x128xi32>
    %35 = arith.select %32, %34, %23 : vector<16x128xi1>, vector<16x128xi32>
    %c0_i32_20 = arith.constant 0 : i32
    %36 = vector.broadcast %c0_i32_20 : i32 to vector<16x128xi32>
    %37 = arith.cmpi eq, %35, %36 : vector<16x128xi32>
    %cst_21 = arith.constant 0.000000e+00 : f32
    %38 = vector.broadcast %cst_21 : f32 to vector<16x128xf32>
    %39 = arith.select %37, %38, %18 : vector<16x128xi1>, vector<16x128xf32>
    %40 = arith.addf %39, %12 : vector<16x128xf32>
    %41 = vector.extract_strided_slice %15 {offsets = [1, 0], sizes = [15, 128], strides = [1, 1]} : vector<16x128xf32> to vector<15x128xf32>
    %cst_22 = arith.constant 0.000000e+00 : f32
    %42 = vector.broadcast %cst_22 : f32 to vector<1x128xf32>
    %43 = tpu.concatenate %41, %42 in 0 : vector<15x128xf32>, vector<1x128xf32> -> vector<16x128xf32>
    %44 = tpu.iota {dimensions = array<i32: 0>} : vector<16x128xi32>
    %c16_i32_23 = arith.constant 16 : i32
    %c0_i32_24 = arith.constant 0 : i32
    %45 = arith.cmpi eq, %c16_i32_23, %c0_i32_24 : i32
    %c1_i32_25 = arith.constant 1 : i32
    %46 = arith.select %45, %c1_i32_25, %c16_i32_23 : i32
    %47 = vector.broadcast %46 : i32 to vector<16x128xi32>
    %48 = arith.remsi %44, %47 : vector<16x128xi32>
    %c0_i32_26 = arith.constant 0 : i32
    %49 = vector.broadcast %c0_i32_26 : i32 to vector<16x128xi32>
    %50 = arith.cmpi ne, %48, %49 : vector<16x128xi32>
    %c0_i32_27 = arith.constant 0 : i32
    %51 = vector.broadcast %c0_i32_27 : i32 to vector<16x128xi32>
    %52 = arith.cmpi slt, %48, %51 : vector<16x128xi32>
    %c0_i32_28 = arith.constant 0 : i32
    %53 = arith.cmpi slt, %46, %c0_i32_28 : i32
    %54 = vector.broadcast %53 : i1 to vector<16x128xi1>
    %55 = vector.broadcast %54 : vector<16x128xi1> to vector<16x128xi1>
    %56 = arith.xori %52, %55 : vector<16x128xi1>
    %57 = arith.andi %56, %50 : vector<16x128xi1>
    %58 = vector.broadcast %46 : i32 to vector<16x128xi32>
    %59 = arith.addi %48, %58 : vector<16x128xi32>
    %60 = arith.select %57, %59, %48 : vector<16x128xi1>, vector<16x128xi32>
    %c15_i32 = arith.constant 15 : i32
    %61 = vector.broadcast %c15_i32 : i32 to vector<16x128xi32>
    %62 = arith.cmpi eq, %60, %61 : vector<16x128xi32>
    %cst_29 = arith.constant 0.000000e+00 : f32
    %63 = vector.broadcast %cst_29 : f32 to vector<16x128xf32>
    %64 = arith.select %62, %63, %43 : vector<16x128xi1>, vector<16x128xf32>
    %65 = arith.addf %40, %64 : vector<16x128xf32>
    %c0_30 = arith.constant 0 : index
    %c0_31 = arith.constant 0 : index
    %66 = vector.load %arg5[%c0_30, %c0_31] : memref<1x128xf32, #tpu.memory_space<vmem>>, vector<1x128xf32>
    %67 = vector.broadcast %66 : vector<1x128xf32> to vector<16x128xf32>
    %68 = arith.addf %65, %67 : vector<16x128xf32>
    %cst_32 = arith.constant 0.000000e+00 : f32
    %69 = vector.broadcast %cst_32 : f32 to vector<16x128xf32>
    %70 = arith.maximumf %68, %69 : vector<16x128xf32>
    %c0_33 = arith.constant 0 : index
    %c0_34 = arith.constant 0 : index
    %c0_35 = arith.constant 0 : index
    %71 = vector.load %arg6[%c0_33, %c0_34, %c0_35] : memref<3x128x128xf32, #tpu.memory_space<vmem>>, vector<1x128x128xf32>
    %72 = vector.shape_cast %71 : vector<1x128x128xf32> to vector<128x128xf32>
    %cst_36 = arith.constant dense<0.000000e+00> : vector<16x128xf32>
    %73 = tpu.matmul %70, %72, %cst_36 {dimension_numbers = #tpu.dot_dimension_numbers<[1], [0], [0], [1], [0, 0, 1, 1], [], []>} : vector<16x128xf32>, vector<128x128xf32>, vector<16x128xf32> -> vector<16x128xf32>
    %c1_37 = arith.constant 1 : index
    %c0_38 = arith.constant 0 : index
    %c0_39 = arith.constant 0 : index
    %74 = vector.load %arg6[%c1_37, %c0_38, %c0_39] : memref<3x128x128xf32, #tpu.memory_space<vmem>>, vector<1x128x128xf32>
    %75 = vector.shape_cast %74 : vector<1x128x128xf32> to vector<128x128xf32>
    %cst_40 = arith.constant dense<0.000000e+00> : vector<16x128xf32>
    %76 = tpu.matmul %70, %75, %cst_40 {dimension_numbers = #tpu.dot_dimension_numbers<[1], [0], [0], [1], [0, 0, 1, 1], [], []>} : vector<16x128xf32>, vector<128x128xf32>, vector<16x128xf32> -> vector<16x128xf32>
    %c2_41 = arith.constant 2 : index
    %c0_42 = arith.constant 0 : index
    %c0_43 = arith.constant 0 : index
    %77 = vector.load %arg6[%c2_41, %c0_42, %c0_43] : memref<3x128x128xf32, #tpu.memory_space<vmem>>, vector<1x128x128xf32>
    %78 = vector.shape_cast %77 : vector<1x128x128xf32> to vector<128x128xf32>
    %cst_44 = arith.constant dense<0.000000e+00> : vector<16x128xf32>
    %79 = tpu.matmul %70, %78, %cst_44 {dimension_numbers = #tpu.dot_dimension_numbers<[1], [0], [0], [1], [0, 0, 1, 1], [], []>} : vector<16x128xf32>, vector<128x128xf32>, vector<16x128xf32> -> vector<16x128xf32>
    %cst_45 = arith.constant 0.000000e+00 : f32
    %80 = vector.broadcast %cst_45 : f32 to vector<1x128xf32>
    %81 = vector.extract_strided_slice %73 {offsets = [0, 0], sizes = [15, 128], strides = [1, 1]} : vector<16x128xf32> to vector<15x128xf32>
    %82 = tpu.concatenate %80, %81 in 0 : vector<1x128xf32>, vector<15x128xf32> -> vector<16x128xf32>
    %83 = tpu.iota {dimensions = array<i32: 0>} : vector<16x128xi32>
    %c16_i32_46 = arith.constant 16 : i32
    %c0_i32_47 = arith.constant 0 : i32
    %84 = arith.cmpi eq, %c16_i32_46, %c0_i32_47 : i32
    %c1_i32_48 = arith.constant 1 : i32
    %85 = arith.select %84, %c1_i32_48, %c16_i32_46 : i32
    %86 = vector.broadcast %85 : i32 to vector<16x128xi32>
    %87 = arith.remsi %83, %86 : vector<16x128xi32>
    %c0_i32_49 = arith.constant 0 : i32
    %88 = vector.broadcast %c0_i32_49 : i32 to vector<16x128xi32>
    %89 = arith.cmpi ne, %87, %88 : vector<16x128xi32>
    %c0_i32_50 = arith.constant 0 : i32
    %90 = vector.broadcast %c0_i32_50 : i32 to vector<16x128xi32>
    %91 = arith.cmpi slt, %87, %90 : vector<16x128xi32>
    %c0_i32_51 = arith.constant 0 : i32
    %92 = arith.cmpi slt, %85, %c0_i32_51 : i32
    %93 = vector.broadcast %92 : i1 to vector<16x128xi1>
    %94 = vector.broadcast %93 : vector<16x128xi1> to vector<16x128xi1>
    %95 = arith.xori %91, %94 : vector<16x128xi1>
    %96 = arith.andi %95, %89 : vector<16x128xi1>
    %97 = vector.broadcast %85 : i32 to vector<16x128xi32>
    %98 = arith.addi %87, %97 : vector<16x128xi32>
    %99 = arith.select %96, %98, %87 : vector<16x128xi1>, vector<16x128xi32>
    %c0_i32_52 = arith.constant 0 : i32
    %100 = vector.broadcast %c0_i32_52 : i32 to vector<16x128xi32>
    %101 = arith.cmpi eq, %99, %100 : vector<16x128xi32>
    %cst_53 = arith.constant 0.000000e+00 : f32
    %102 = vector.broadcast %cst_53 : f32 to vector<16x128xf32>
    %103 = arith.select %101, %102, %82 : vector<16x128xi1>, vector<16x128xf32>
    %104 = arith.addf %103, %76 : vector<16x128xf32>
    %105 = vector.extract_strided_slice %79 {offsets = [1, 0], sizes = [15, 128], strides = [1, 1]} : vector<16x128xf32> to vector<15x128xf32>
    %cst_54 = arith.constant 0.000000e+00 : f32
    %106 = vector.broadcast %cst_54 : f32 to vector<1x128xf32>
    %107 = tpu.concatenate %105, %106 in 0 : vector<15x128xf32>, vector<1x128xf32> -> vector<16x128xf32>
    %108 = tpu.iota {dimensions = array<i32: 0>} : vector<16x128xi32>
    %c16_i32_55 = arith.constant 16 : i32
    %c0_i32_56 = arith.constant 0 : i32
    %109 = arith.cmpi eq, %c16_i32_55, %c0_i32_56 : i32
    %c1_i32_57 = arith.constant 1 : i32
    %110 = arith.select %109, %c1_i32_57, %c16_i32_55 : i32
    %111 = vector.broadcast %110 : i32 to vector<16x128xi32>
    %112 = arith.remsi %108, %111 : vector<16x128xi32>
    %c0_i32_58 = arith.constant 0 : i32
    %113 = vector.broadcast %c0_i32_58 : i32 to vector<16x128xi32>
    %114 = arith.cmpi ne, %112, %113 : vector<16x128xi32>
    %c0_i32_59 = arith.constant 0 : i32
    %115 = vector.broadcast %c0_i32_59 : i32 to vector<16x128xi32>
    %116 = arith.cmpi slt, %112, %115 : vector<16x128xi32>
    %c0_i32_60 = arith.constant 0 : i32
    %117 = arith.cmpi slt, %110, %c0_i32_60 : i32
    %118 = vector.broadcast %117 : i1 to vector<16x128xi1>
    %119 = vector.broadcast %118 : vector<16x128xi1> to vector<16x128xi1>
    %120 = arith.xori %116, %119 : vector<16x128xi1>
    %121 = arith.andi %120, %114 : vector<16x128xi1>
    %122 = vector.broadcast %110 : i32 to vector<16x128xi32>
    %123 = arith.addi %112, %122 : vector<16x128xi32>
    %124 = arith.select %121, %123, %112 : vector<16x128xi1>, vector<16x128xi32>
    %c15_i32_61 = arith.constant 15 : i32
    %125 = vector.broadcast %c15_i32_61 : i32 to vector<16x128xi32>
    %126 = arith.cmpi eq, %124, %125 : vector<16x128xi32>
    %cst_62 = arith.constant 0.000000e+00 : f32
    %127 = vector.broadcast %cst_62 : f32 to vector<16x128xf32>
    %128 = arith.select %126, %127, %107 : vector<16x128xi1>, vector<16x128xf32>
    %129 = arith.addf %104, %128 : vector<16x128xf32>
    %c0_63 = arith.constant 0 : index
    %c0_64 = arith.constant 0 : index
    %130 = vector.load %arg7[%c0_63, %c0_64] : memref<1x128xf32, #tpu.memory_space<vmem>>, vector<1x128xf32>
    %131 = vector.broadcast %130 : vector<1x128xf32> to vector<16x128xf32>
    %132 = arith.addf %129, %131 : vector<16x128xf32>
    %cst_65 = arith.constant 0.000000e+00 : f32
    %133 = vector.broadcast %cst_65 : f32 to vector<16x128xf32>
    %134 = arith.maximumf %132, %133 : vector<16x128xf32>
    %135 = arith.addf %134, %6 : vector<16x128xf32>
    %cst_66 = arith.constant 0.000000e+00 : f32
    %136 = vector.broadcast %cst_66 : f32 to vector<16x128xf32>
    %137 = arith.maximumf %135, %136 : vector<16x128xf32>
    %138 = vector.shape_cast %137 : vector<16x128xf32> to vector<1x16x128xf32>
    %c0_67 = arith.constant 0 : index
    %c0_68 = arith.constant 0 : index
    %c0_69 = arith.constant 0 : index
    %139 = vector.load %arg8[%c0_67, %c0_68, %c0_69] : memref<1x16x128xf32, #tpu.memory_space<vmem>>, vector<1x16x128xf32>
    tpu.vector_store %arg8[%c0_67, %c0_68, %c0_69], %138 {strides = array<i32>} : memref<1x16x128xf32, #tpu.memory_space<vmem>>, vector<1x16x128xf32>,
    return
  }
  func.func @transform_0(%arg0: i32) -> (i32, i32, i32) {
    %c0_i32 = arith.constant 0 : i32
    %c0_i32_0 = arith.constant 0 : i32
    %c0_i32_1 = arith.constant 0 : i32
    return %arg0, %c0_i32, %c0_i32_0 : i32, i32, i32
  }
  func.func @transform_1(%arg0: i32) -> (i32, i32) {
    %c0_i32 = arith.constant 0 : i32
    %c0_i32_0 = arith.constant 0 : i32
    %c0_i32_1 = arith.constant 0 : i32
    return %c0_i32, %c0_i32_0 : i32, i32
  }
  func.func @transform_2(%arg0: i32) -> (i32, i32) {
    %c0_i32 = arith.constant 0 : i32
    %c0_i32_0 = arith.constant 0 : i32
    %c0_i32_1 = arith.constant 0 : i32
    return %c0_i32, %c0_i32_0 : i32, i32
  }
  func.func @transform_3(%arg0: i32) -> (i32, i32, i32) {
    %c0_i32 = arith.constant 0 : i32
    %c0_i32_0 = arith.constant 0 : i32
    %c0_i32_1 = arith.constant 0 : i32
    %c0_i32_2 = arith.constant 0 : i32
    return %c0_i32, %c0_i32_0, %c0_i32_1 : i32, i32, i32
  }
  func.func @transform_4(%arg0: i32) -> (i32, i32) {
    %c0_i32 = arith.constant 0 : i32
    %c0_i32_0 = arith.constant 0 : i32
    %c0_i32_1 = arith.constant 0 : i32
    return %c0_i32, %c0_i32_0 : i32, i32
  }
  func.func @transform_5(%arg0: i32) -> (i32, i32, i32) {
    %c0_i32 = arith.constant 0 : i32
    %c0_i32_0 = arith.constant 0 : i32
    %c0_i32_1 = arith.constant 0 : i32
    %c0_i32_2 = arith.constant 0 : i32
    return %c0_i32, %c0_i32_0, %c0_i32_1 : i32, i32, i32
  }
  func.func @transform_6(%arg0: i32) -> (i32, i32) {
    %c0_i32 = arith.constant 0 : i32
    %c0_i32_0 = arith.constant 0 : i32
    %c0_i32_1 = arith.constant 0 : i32
    return %c0_i32, %c0_i32_0 : i32, i32
  }
  func.func @transform_7(%arg0: i32) -> (i32, i32, i32) {
    %c0_i32 = arith.constant 0 : i32
    %c0_i32_0 = arith.constant 0 : i32
    %c0_i32_1 = arith.constant 0 : i32
    return %arg0, %c0_i32, %c0_i32_0 : i32, i32, i32
  }
}

</mosaic_0001>

<llo_original>
// kernel: tile.18
$region0: #{tile.18}
  #allocation0 [shape = 's32[1]{0}', space=sflag, size = 0x4, scoped, tag = 'scoped memory for tile.18']
  %s0 = inlined_call_operand.vmem [shape: f32[8], index: 0, kind: input, shape index: {}]
  %s1 = inlined_call_operand.vmem [shape: f32[16,8], index: 1, kind: output, shape index: {}]
  // Predicated region
  $region2: #{tile.18} parent=0 // pred_check
    _
  $region3: #{tile.18} parent=0 // pred_check_branch
    %3 = sbr.rel (0) target = $region5
  $region4: #{tile.18} parent=0 // pred_region
    _
  $region5: #{tile.18} parent=0 // pred_fallthru
    _
  %v4 = vld [vmem:[%s0] ss:$0 sm:$0xff]
  %5 = vst [vmem:[%s1] sm:$0xff] %v4
  %s6 = scalar_lea.vmem %s1, 8
  %7 = vst [vmem:[%s6] sm:$0xff] %v4

// kernel: tile.19
$region0: #{tile.19}
  %s0 = inlined_call_operand.vmem [shape: f32[16,8], index: 0, kind: input, shape index: {}]
  %s1 = inlined_call_operand.vmem [shape: f32[1,128], index: 1, kind: output, shape index: {}]
  $region1: #{tile.19} parent=0
    #allocation0 [shape = 'u8[4096]{0}', space=vmem, size = 0x1000, scoped, tag = 'scoped mem for output reshape']
    %v2 = vld [vmem:[%s0] sm:$0x1]
    %vm3 = vcmask 64512
    %4 = vst.msk [vmem:[#allocation0] sm:$0x1] %vm3, %v2
    %s5 = scalar_lea.vmem %s0, 15
    %v6 = vld [vmem:[%s5] sm:$0x1]
    %7 = vrot.lane.b32.xlu0 %v6, 120
    %v8 = vpop.permute.xlu0 %7
    %vm9 = vcmask 1048512
    %10 = vst.msk [vmem:[#allocation0] sm:$0x1] %vm9, %v8
    %s11 = scalar_lea.vmem %s0, 14
    %v12 = vld [vmem:[%s11] sm:$0x1]
    %13 = vrot.lane.b32.xlu0 %v12, 112
    %v14 = vpop.permute.xlu0 %13
    %vm15 = vcmask 982912
    %16 = vst.msk [vmem:[#allocation0] sm:$0x1] %vm15, %v14
    %s17 = scalar_lea.vmem %s0, 13
    %v18 = vld [vmem:[%s17] sm:$0x1]
    %19 = vrot.lane.b32.xlu0 %v18, 104
    %v20 = vpop.permute.xlu0 %19
    %vm21 = vcmask 917312
    %22 = vst.msk [vmem:[#allocation0] sm:$0x1] %vm21, %v20
    %s23 = scalar_lea.vmem %s0, 12
    %v24 = vld [vmem:[%s23] sm:$0x1]
    %25 = vrot.lane.b32.xlu0 %v24, 96
    %v26 = vpop.permute.xlu0 %25
    %vm27 = vcmask 851712
    %28 = vst.msk [vmem:[#allocation0] sm:$0x1] %vm27, %v26
    %s29 = scalar_lea.vmem %s0, 11
    %v30 = vld [vmem:[%s29] sm:$0x1]
    %31 = vrot.lane.b32.xlu0 %v30, 88
    %v32 = vpop.permute.xlu0 %31
    %vm33 = vcmask 786112
    %34 = vst.msk [vmem:[#allocation0] sm:$0x1] %vm33, %v32
    %s35 = scalar_lea.vmem %s0, 10
    %v36 = vld [vmem:[%s35] sm:$0x1]
    %37 = vrot.lane.b32.xlu0 %v36, 80
    %v38 = vpop.permute.xlu0 %37
    %vm39 = vcmask 720512
    %40 = vst.msk [vmem:[#allocation0] sm:$0x1] %vm39, %v38
    %s41 = scalar_lea.vmem %s0, 9
    %v42 = vld [vmem:[%s41] sm:$0x1]
    %43 = vrot.lane.b32.xlu0 %v42, 72
    %v44 = vpop.permute.xlu0 %43
    %vm45 = vcmask 654912
    %46 = vst.msk [vmem:[#allocation0] sm:$0x1] %vm45, %v44
    %s47 = scalar_lea.vmem %s0, 8
    %v48 = vld [vmem:[%s47] sm:$0x1]
    %49 = vrot.lane.b32.xlu0 %v48, 64
    %v50 = vpop.permute.xlu0 %49
    %vm51 = vcmask 589312
    %52 = vst.msk [vmem:[#allocation0] sm:$0x1] %vm51, %v50
    %s53 = scalar_lea.vmem %s0, 7
    %v54 = vld [vmem:[%s53] sm:$0x1]
    %55 = vrot.lane.b32.xlu0 %v54, 56
    %v56 = vpop.permute.xlu0 %55
    %vm57 = vcmask 523712
    %58 = vst.msk [vmem:[#allocation0] sm:$0x1] %vm57, %v56
    %s59 = scalar_lea.vmem %s0, 6
    %v60 = vld [vmem:[%s59] sm:$0x1]
    %61 = vrot.lane.b32.xlu0 %v60, 48
    %v62 = vpop.permute.xlu0 %61
    %vm63 = vcmask 458112
    %64 = vst.msk [vmem:[#allocation0] sm:$0x1] %vm63, %v62
    %s65 = scalar_lea.vmem %s0, 5
    %v66 = vld [vmem:[%s65] sm:$0x1]
    %67 = vrot.lane.b32.xlu0 %v66, 40
    %v68 = vpop.permute.xlu0 %67
    %vm69 = vcmask 392512
    %70 = vst.msk [vmem:[#allocation0] sm:$0x1] %vm69, %v68
    %s71 = scalar_lea.vmem %s0, 4
    %v72 = vld [vmem:[%s71] sm:$0x1]
    %73 = vrot.lane.b32.xlu0 %v72, 32
    %v74 = vpop.permute.xlu0 %73
    %vm75 = vcmask 326912
    %76 = vst.msk [vmem:[#allocation0] sm:$0x1] %vm75, %v74
    %s77 = scalar_lea.vmem %s0, 3
    %v78 = vld [vmem:[%s77] sm:$0x1]
    %79 = vrot.lane.b32.xlu0 %v78, 24
    %v80 = vpop.permute.xlu0 %79
    %vm81 = vcmask 261312
    %82 = vst.msk [vmem:[#allocation0] sm:$0x1] %vm81, %v80
    %s83 = scalar_lea.vmem %s0, 2
    %v84 = vld [vmem:[%s83] sm:$0x1]
    %85 = vrot.lane.b32.xlu0 %v84, 16
    %v86 = vpop.permute.xlu0 %85
    %vm87 = vcmask 195712
    %88 = vst.msk [vmem:[#allocation0] sm:$0x1] %vm87, %v86
    %s89 = scalar_lea.vmem %s0, 1
    %v90 = vld [vmem:[%s89] sm:$0x1]
    %91 = vrot.lane.b32.xlu0 %v90, 8
    %v92 = vpop.permute.xlu0 %91
    %vm93 = vcmask 130112
    %94 = vst.msk [vmem:[#allocation0] sm:$0x1] %vm93, %v92
    %s96 = sshllo.u32 0, 1
    %v98 = vld [vmem:[#allocation0] sm:%s96]
    %s99 = sshllo.u32 0, 1
    %100 = vst [vmem:[%s1] sm:%s99] %v98

// kernel: resblock_d3_forward.1
$region0: #{resblock_d3_forward.1}
  #allocation0 [shape = 'u32[]', space=smem, size = 0x4, offset = 0x4, fixed_abs, tag = 'smem constant byte address 0x4 - core index']
  #allocation1 [shape = 'u32[144,128]{1,0:T(1,128)}', space=vmem, size = 0x12000, scoped, tag = 'internal scratch']
  %s0 = inlined_call_operand.vmem [shape: f32[2,16,64], index: 0, kind: input, shape index: {}]
  %s1 = inlined_call_operand.vmem [shape: f32[64,128], index: 1, kind: input, shape index: {}]
  %s2 = inlined_call_operand.vmem [shape: f32[1,128], index: 2, kind: input, shape index: {}]
  %s3 = inlined_call_operand.vmem [shape: f32[3,64,128], index: 3, kind: input, shape index: {}]
  %s4 = inlined_call_operand.vmem [shape: f32[1,128], index: 4, kind: input, shape index: {}]
  %s5 = inlined_call_operand.vmem [shape: f32[3,128,128], index: 5, kind: input, shape index: {}]
  %s6 = inlined_call_operand.vmem [shape: f32[1,128], index: 6, kind: input, shape index: {}]
  %s7 = inlined_call_operand.vmem [shape: f32[2,16,128], index: 7, kind: output, shape index: {}]
  %s8 = sld [smem:[#allocation0]]
  $region61: #{resblock_d3_forward.1} parent=0
    _
  %s10 = ssub.s32 1, %s8
  %s11 = scalar_select 0, %s10, %s8
  loop: start=0, step=1, limit=4
  $region2: #{resblock_d3_forward.1} parent=0 // loop_pre_header
    _
  $region3: #{resblock_d3_forward.1} parent=0 // loop_header
    %s13 = sphi 0, %s17
    %p14 = scmp.ge.s32.totalorder %s13, 4
    %s23 = sphi 0, %s25
    %s26 = sphi 0, %s23
    %s27 = sphi 0, %s26
    %s43 = sphi 0, %s27
    %s47 = sphi 0, %s47
    %s49 = sphi 0, %s47
    %s50 = sphi 0, %s49
    %s64 = sphi 0, %s50
    %s68 = sphi 0, %s68
    %s70 = sphi 0, %s68
    %s71 = sphi 0, %s70
    %s85 = sphi 0, %s71
    %s89 = sphi 0, %s89
    %s91 = sphi 0, %s89
    %s92 = sphi 0, %s91
    %s106 = sphi 0, %s92
    %s110 = sphi 0, %s110
    %s112 = sphi 0, %s110
    %s113 = sphi 0, %s112
    %s127 = sphi 0, %s113
    %s131 = sphi 0, %s131
    %s133 = sphi 0, %s131
    %s134 = sphi 0, %s133
    %s148 = sphi 0, %s134
    %s152 = sphi 0, %s152
    %s154 = sphi 0, %s152
    %s155 = sphi 0, %s154
    %s169 = sphi 0, %s155
    %s175 = sphi 0, %s177
    %s178 = sphi 0, %s175
    %s179 = sphi 0, %s178
    %s195 = sphi 0, %s179
  $region4: #{resblock_d3_forward.1} parent=0 // loop_header_branch
    %16 = sbr.rel (%p14) target = $region8
  $region5: #{resblock_d3_forward.1} parent=0 // loop_body
    %s18 = ssub.s32 %s13, 1
    %s19 = ssub.s32 %s13, 2
    %s20 = sadd.s32 %s13, 1
    %s21 = ssub.s32 %s13, %s20
    %p22 = scmp.eq.s32.totalorder %s21, 0
    %s24 = sadd.s32 %s23, 1
    %s25 = scalar_select %p22, %s23, %s24
    %p28 = pneg %p22
    %p29 = scmp.eq.s32.totalorder %s13, 1
    %p30 = por %p28, %p29
    %p31 = scmp.ne.s32.totalorder %s23, %s26
    %p32 = scmp.eq.s32.totalorder %s13, 0
    %p33 = por %p31, %p32
    %p34 = scmp.ne.s32.totalorder %s23, %s26
    %p35 = scmp.eq.s32.totalorder %s18, 1
    %p36 = por %p34, %p35
    %p37 = scmp.ne.s32.totalorder %s26, %s27
    %p38 = scmp.eq.s32.totalorder %s18, 0
    %p39 = por %p37, %p38
    %p40 = scmp.ne.s32.totalorder %s26, %s27
    %p41 = scmp.eq.s32.totalorder %s19, 1
    %p42 = por %p40, %p41
    %p44 = scmp.ne.s32.totalorder %s27, %s43
    %p45 = scmp.eq.s32.totalorder %s19, 0
    %p46 = por %p44, %p45
    %s48 = sadd.s32 %s47, 1
    %p51 = scmp.eq.s32.totalorder %s13, 1
    %p52 = scmp.ne.s32.totalorder %s47, %s49
    %p53 = scmp.eq.s32.totalorder %s13, 0
    %p54 = por %p52, %p53
    %p55 = scmp.ne.s32.totalorder %s47, %s49
    %p56 = scmp.eq.s32.totalorder %s18, 1
    %p57 = por %p55, %p56
    %p58 = scmp.ne.s32.totalorder %s49, %s50
    %p59 = scmp.eq.s32.totalorder %s18, 0
    %p60 = por %p58, %p59
    %p61 = scmp.ne.s32.totalorder %s49, %s50
    %p62 = scmp.eq.s32.totalorder %s19, 1
    %p63 = por %p61, %p62
    %p65 = scmp.ne.s32.totalorder %s50, %s64
    %p66 = scmp.eq.s32.totalorder %s19, 0
    %p67 = por %p65, %p66
    %s69 = sadd.s32 %s68, 1
    %p72 = scmp.eq.s32.totalorder %s13, 1
    %p73 = scmp.ne.s32.totalorder %s68, %s70
    %p74 = scmp.eq.s32.totalorder %s13, 0
    %p75 = por %p73, %p74
    %p76 = scmp.ne.s32.totalorder %s68, %s70
    %p77 = scmp.eq.s32.totalorder %s18, 1
    %p78 = por %p76, %p77
    %p79 = scmp.ne.s32.totalorder %s70, %s71
    %p80 = scmp.eq.s32.totalorder %s18, 0
    %p81 = por %p79, %p80
    %p82 = scmp.ne.s32.totalorder %s70, %s71
    %p83 = scmp.eq.s32.totalorder %s19, 1
    %p84 = por %p82, %p83
    %p86 = scmp.ne.s32.totalorder %s71, %s85
    %p87 = scmp.eq.s32.totalorder %s19, 0
    %p88 = por %p86, %p87
    %s90 = sadd.s32 %s89, 1
    %p93 = scmp.eq.s32.totalorder %s13, 1
    %p94 = scmp.ne.s32.totalorder %s89, %s91
    %p95 = scmp.eq.s32.totalorder %s13, 0
    %p96 = por %p94, %p95
    %p97 = scmp.ne.s32.totalorder %s89, %s91
    %p98 = scmp.eq.s32.totalorder %s18, 1
    %p99 = por %p97, %p98
    %p100 = scmp.ne.s32.totalorder %s91, %s92
    %p101 = scmp.eq.s32.totalorder %s18, 0
    %p102 = por %p100, %p101
    %p103 = scmp.ne.s32.totalorder %s91, %s92
    %p104 = scmp.eq.s32.totalorder %s19, 1
    %p105 = por %p103, %p104
    %p107 = scmp.ne.s32.totalorder %s92, %s106
    %p108 = scmp.eq.s32.totalorder %s19, 0
    %p109 = por %p107, %p108
    %s111 = sadd.s32 %s110, 1
    %p114 = scmp.eq.s32.totalorder %s13, 1
    %p115 = scmp.ne.s32.totalorder %s110, %s112
    %p116 = scmp.eq.s32.totalorder %s13, 0
    %p117 = por %p115, %p116
    %p118 = scmp.ne.s32.totalorder %s110, %s112
    %p119 = scmp.eq.s32.totalorder %s18, 1
    %p120 = por %p118, %p119
    %p121 = scmp.ne.s32.totalorder %s112, %s113
    %p122 = scmp.eq.s32.totalorder %s18, 0
    %p123 = por %p121, %p122
    %p124 = scmp.ne.s32.totalorder %s112, %s113
    %p125 = scmp.eq.s32.totalorder %s19, 1
    %p126 = por %p124, %p125
    %p128 = scmp.ne.s32.totalorder %s113, %s127
    %p129 = scmp.eq.s32.totalorder %s19, 0
    %p130 = por %p128, %p129
    %s132 = sadd.s32 %s131, 1
    %p135 = scmp.eq.s32.totalorder %s13, 1
    %p136 = scmp.ne.s32.totalorder %s131, %s133
    %p137 = scmp.eq.s32.totalorder %s13, 0
    %p138 = por %p136, %p137
    %p139 = scmp.ne.s32.totalorder %s131, %s133
    %p140 = scmp.eq.s32.totalorder %s18, 1
    %p141 = por %p139, %p140
    %p142 = scmp.ne.s32.totalorder %s133, %s134
    %p143 = scmp.eq.s32.totalorder %s18, 0
    %p144 = por %p142, %p143
    %p145 = scmp.ne.s32.totalorder %s133, %s134
    %p146 = scmp.eq.s32.totalorder %s19, 1
    %p147 = por %p145, %p146
    %p149 = scmp.ne.s32.totalorder %s134, %s148
    %p150 = scmp.eq.s32.totalorder %s19, 0
    %p151 = por %p149, %p150
    %s153 = sadd.s32 %s152, 1
    %p156 = scmp.eq.s32.totalorder %s13, 1
    %p157 = scmp.ne.s32.totalorder %s152, %s154
    %p158 = scmp.eq.s32.totalorder %s13, 0
    %p159 = por %p157, %p158
    %p160 = scmp.ne.s32.totalorder %s152, %s154
    %p161 = scmp.eq.s32.totalorder %s18, 1
    %p162 = por %p160, %p161
    %p163 = scmp.ne.s32.totalorder %s154, %s155
    %p164 = scmp.eq.s32.totalorder %s18, 0
    %p165 = por %p163, %p164
    %p166 = scmp.ne.s32.totalorder %s154, %s155
    %p167 = scmp.eq.s32.totalorder %s19, 1
    %p168 = por %p166, %p167
    %p170 = scmp.ne.s32.totalorder %s155, %s169
    %p171 = scmp.eq.s32.totalorder %s19, 0
    %p172 = por %p170, %p171
    %s173 = ssub.s32 %s13, %s20
    %p174 = scmp.eq.s32.totalorder %s173, 0
    %s176 = sadd.s32 %s175, 1
    %s177 = scalar_select %p174, %s175, %s176
    %p180 = pneg %p174
    %p181 = scmp.eq.s32.totalorder %s13, 1
    %p182 = por %p180, %p181
    %p183 = scmp.ne.s32.totalorder %s175, %s178
    %p184 = scmp.eq.s32.totalorder %s13, 0
    %p185 = por %p183, %p184
    %p186 = scmp.ne.s32.totalorder %s175, %s178
    %p187 = scmp.eq.s32.totalorder %s18, 1
    %p188 = por %p186, %p187
    %p189 = scmp.ne.s32.totalorder %s178, %s179
    %p190 = scmp.eq.s32.totalorder %s18, 0
    %p191 = por %p189, %p190
    %p192 = scmp.ne.s32.totalorder %s178, %s179
    %p193 = scmp.eq.s32.totalorder %s19, 1
    %p194 = por %p192, %p193
    %p196 = scmp.ne.s32.totalorder %s179, %s195
    %p197 = scmp.eq.s32.totalorder %s19, 0
    %p198 = por %p196, %p197
    %p199 = scmp.le.s32.totalorder 1, %s13
    %p200 = scmp.lt.s32.totalorder %s13, 3
    %p201 = pnand %p199, %p200
    %p202 = pneg %p201
    // Predicated region
    $region9: #{resblock_d3_forward.1} parent=5 // pred_check
      _
    $region10: #{resblock_d3_forward.1} parent=5 // pred_check_branch
      %204 = sbr.rel (%p201) target = $region12
    $region11: #{resblock_d3_forward.1} parent=5 // pred_region
      %s205 = ssub.s32 %s13, 1
      // Predicated region
      $region13: #{resblock_d3_forward.1} parent=11 // pred_check
        %p206 = pneg %p60
      $region14: #{resblock_d3_forward.1} parent=11 // pred_check_branch
        %208 = sbr.rel (%p206) target = $region16
      $region15: #{resblock_d3_forward.1} parent=11 // pred_region
        _
      $region16: #{resblock_d3_forward.1} parent=11 // pred_fallthru
        _
      // Predicated region
      $region17: #{resblock_d3_forward.1} parent=11 // pred_check
        %p209 = pneg %p81
      $region18: #{resblock_d3_forward.1} parent=11 // pred_check_branch
        %211 = sbr.rel (%p209) target = $region20
      $region19: #{resblock_d3_forward.1} parent=11 // pred_region
        _
      $region20: #{resblock_d3_forward.1} parent=11 // pred_fallthru
        _
      // Predicated region
      $region21: #{resblock_d3_forward.1} parent=11 // pred_check
        %p212 = pneg %p102
      $region22: #{resblock_d3_forward.1} parent=11 // pred_check_branch
        %214 = sbr.rel (%p212) target = $region24
      $region23: #{resblock_d3_forward.1} parent=11 // pred_region
        _
      $region24: #{resblock_d3_forward.1} parent=11 // pred_fallthru
        _
      // Predicated region
      $region25: #{resblock_d3_forward.1} parent=11 // pred_check
        %p215 = pneg %p123
      $region26: #{resblock_d3_forward.1} parent=11 // pred_check_branch
        %217 = sbr.rel (%p215) target = $region28
      $region27: #{resblock_d3_forward.1} parent=11 // pred_region
        _
      $region28: #{resblock_d3_forward.1} parent=11 // pred_fallthru
        _
      // Predicated region
      $region29: #{resblock_d3_forward.1} parent=11 // pred_check
        %p218 = pneg %p144
      $region30: #{resblock_d3_forward.1} parent=11 // pred_check_branch
        %220 = sbr.rel (%p218) target = $region32
      $region31: #{resblock_d3_forward.1} parent=11 // pred_region
        _
      $region32: #{resblock_d3_forward.1} parent=11 // pred_fallthru
        _
      // Predicated region
      $region33: #{resblock_d3_forward.1} parent=11 // pred_check
        %p221 = pneg %p165
      $region34: #{resblock_d3_forward.1} parent=11 // pred_check_branch
        %223 = sbr.rel (%p221) target = $region36
      $region35: #{resblock_d3_forward.1} parent=11 // pred_region
        _
      $region36: #{resblock_d3_forward.1} parent=11 // pred_fallthru
        _
    $region12: #{resblock_d3_forward.1} parent=5 // pred_fallthru
      _
    %p224 = scmp.lt.s32.totalorder %s13, 2
    // Predicated region
    $region37: #{resblock_d3_forward.1} parent=5 // pred_check
      %p225 = pneg %p224
    $region38: #{resblock_d3_forward.1} parent=5 // pred_check_branch
      %227 = sbr.rel (%p225) target = $region40
    $region39: #{resblock_d3_forward.1} parent=5 // pred_region
      // Predicated region
      $region41: #{resblock_d3_forward.1} parent=39 // pred_check
        %p228 = pneg %p33
      $region42: #{resblock_d3_forward.1} parent=39 // pred_check_branch
        %230 = sbr.rel (%p228) target = $region44
      $region43: #{resblock_d3_forward.1} parent=39 // pred_region
        %p231 = scmp.lt.s32.totalorder %s13, 1
        %s232 = scalar_select %p231, %s13, 1
        %s233 = smul.addr %s232, 2
        %s234 = smul.addr %s233, 8
        %s235 = scalar_lea.vmem %s0, %s234
      $region44: #{resblock_d3_forward.1} parent=39 // pred_fallthru
        _
    $region40: #{resblock_d3_forward.1} parent=5 // pred_fallthru
      _
    %p236 = scmp.le.s32.totalorder 1, %s13
    %p237 = scmp.lt.s32.totalorder %s13, 3
    %p238 = pnand %p236, %p237
    %p239 = pneg %p238
    // Predicated region
    $region45: #{resblock_d3_forward.1} parent=5 // pred_check
      _
    $region46: #{resblock_d3_forward.1} parent=5 // pred_check_branch
      %241 = sbr.rel (%p238) target = $region48
    $region47: #{resblock_d3_forward.1} parent=5 // pred_region
      %s242 = ssub.s32 %s13, 1
      %p243 = scmp.lt.s32.totalorder %s18, 1
      %s244 = scalar_select %p243, %s18, 1
      %s245 = smul.addr %s244, 2
      %s246 = smul.addr %s245, 8
      %s247 = scalar_lea.vmem %s0, %s246
      %p248 = pneg %p39
      %p249 = pneg %p36
      %p250 = pneg %p60
      %p251 = pneg %p57
      %p252 = pneg %p81
      %p253 = pneg %p78
      %p254 = pneg %p102
      %p255 = pneg %p99
      %p256 = pneg %p123
      %p257 = pneg %p120
      %p258 = pneg %p144
      %p259 = pneg %p141
      %p260 = pneg %p165
      %p261 = pneg %p162
      %p262 = pneg %p191
      %p263 = pneg %p188
      %p264 = scmp.lt.s32.totalorder %s18, 1
      %s265 = scalar_select %p264, %s18, 1
      %s266 = smul.addr %s265, 2
      %s267 = smul.addr %s266, 8
      %s268 = scalar_lea.vmem %s7, %s267
      %p269 = scmp.lt.s32.totalorder %s18, 1
      %s270 = scalar_select %p269, %s18, 1
      %s271 = smul.addr %s270, 2
      %s272 = smul.addr %s271, 8
      %s273 = scalar_lea.vmem %s0, %s272
      %p274 = scmp.lt.s32.totalorder %s18, 1
      %s275 = scalar_select %p274, %s18, 1
      %s276 = smul.addr %s275, 2
      %s277 = smul.addr %s276, 8
      %s278 = scalar_lea.vmem %s7, %s277
      %v279 = vld [vmem:[%s273] sm:$0xff]
      %v280 = vld [vmem:[%s273 + $0x8] sm:$0xff]
      %v281 = vld [vmem:[%s1] sm:$0xff]
      %v282 = vld [vmem:[%s1 + $0x8] sm:$0xff]
      %v283 = vld [vmem:[%s1 + $0x10] sm:$0xff]
      %v284 = vld [vmem:[%s1 + $0x18] sm:$0xff]
      %v285 = vld [vmem:[%s1 + $0x20] sm:$0xff]
      %v286 = vld [vmem:[%s1 + $0x28] sm:$0xff]
      %v287 = vld [vmem:[%s1 + $0x30] sm:$0xff]
      %v288 = vld [vmem:[%s1 + $0x38] sm:$0xff]
      %v289 = vld [vmem:[%s2] sm:$0x1]
      %v291 = vlaneseq
      %v292 = vshrl.u32 %v291, 7
      %v293 = vsub.s32 0, %v292
      %v294 = vrot.slane %v289, %v293
      %vm296 = vcmask 523264
      %v298 = vsel %vm296, %v279, 0
      %v301 = vsel %vm296, %v280, 0
      %303 = vmatprep.subr.mxu0 0.0
      %304 = vmatpush1.msra.mxu0 %v281
      %305 = vmatprep.subr.mxu0 0.0
      %306 = vmatpush1.msra.mxu0 %v282
      %307 = vmatprep.subr.mxu0 0.0
      %308 = vmatpush1.msra.mxu0 %v283
      %309 = vmatprep.subr.mxu0 0.0
      %310 = vmatpush1.msra.mxu0 %v284
      %311 = vmatprep.subr.mxu0 0.0
      %312 = vmatpush1.msra.mxu0 %v285
      %313 = vmatprep.subr.mxu0 0.0
      %314 = vmatpush1.msra.mxu0 %v286
      %315 = vmatprep.subr.mxu0 0.0
      %316 = vmatpush1.msra.mxu0 %v287
      %317 = vmatprep.subr.mxu0 0.0
      %318 = vmatpush1.msra.mxu0 %v288
      %319 = vmatprep.subr.mxu0 0.0
      %320 = vmatpush1.msra.mxu0 0.0
      %321 = vmatprep.subr.mxu0 0.0
      %322 = vmatpush1.msra.mxu0 0.0
      %323 = vmatprep.subr.mxu0 0.0
      %324 = vmatpush1.msra.mxu0 0.0
      %325 = vmatprep.subr.mxu0 0.0
      %326 = vmatpush1.msra.mxu0 0.0
      %327 = vmatprep.subr.mxu0 0.0
      %328 = vmatpush1.msra.mxu0 0.0
      %329 = vmatprep.subr.mxu0 0.0
      %330 = vmatpush1.msra.mxu0 0.0
      %331 = vmatprep.subr.mxu0 0.0
      %332 = vmatpush1.msra.mxu0 0.0
      %333 = vmatprep.subr.mxu0 0.0
      %334 = vmatpush1.msra.mxu0 0.0
      %335 = vmatprep.subr.mxu0 0.0
      %336 = vmatpush1.msra.mxu0 0.0
      %337 = vmatprep.subr.mxu0 0.0
      %338 = vmatpush1.msra.mxu0 0.0
      %339 = vmatprep.subr.mxu0 0.0
      %340 = vmatpush1.msra.mxu0 0.0
      %341 = vmatprep.subr.mxu0 0.0
      %342 = vmatpush1.msra.mxu0 0.0
      %343 = vmatprep.subr.mxu0 0.0
      %344 = vmatpush1.msra.mxu0 0.0
      %345 = vmatprep.subr.mxu0 0.0
      %346 = vmatpush1.msra.mxu0 0.0
      %347 = vmatprep.subr.mxu0 0.0
      %348 = vmatpush1.msra.mxu0 0.0
      %349 = vmatprep.subr.mxu0 0.0
      %350 = vmatpush1.msra.mxu0 0.0
      %351 = vmatprep.subr.mxu0 0.0
      %352 = vmatpush1.msra.mxu0 0.0
      %353 = vmatprep.subr.mxu0 0.0
      %354 = vmatpush1.msra.mxu0 0.0
      %355 = vmatprep.subr.mxu0 0.0
      %356 = vmatpush1.msra.mxu0 0.0
      %357 = vmatprep.subr.mxu0 0.0
      %358 = vmatpush1.msra.mxu0 0.0
      %359 = vmatprep.subr.mxu0 0.0
      %360 = vmatpush1.msra.mxu0 0.0
      %361 = vmatprep.subr.mxu0 0.0
      %362 = vmatpush1.msra.mxu0 0.0
      %363 = vmatprep.subr.mxu0 0.0
      %364 = vmatpush1.msra.mxu0 0.0
      %365 = vmatprep.subr.mxu0 0.0
      %366 = vmatpush1.msra.mxu0 0.0
      %367 = vmatprep.mubr.f32.mxu0 0.0
      %368 = vmatmul.mubr.f32.gmra.mrb[0].mxu0 %v298
      %v369 = vpop.f32.mrb[0].mxu0
      %v370 = vadd.f32 %v294, %v369
      %v371 = vpop.f32.mrb[0].mxu0
      %372 = vmatprep.mubr.f32.mxu0 0.0
      %373 = vmatmul.mubr.f32.gmra.mrb[0].mxu0 %v301
      %v374 = vpop.f32.mrb[0].mxu0
      %v375 = vadd.f32 %v294, %v374
      %v376 = vpop.f32.mrb[0].mxu0
      %377 = vdwg.mxu0
      %v378 = vld [vmem:[%s3] sm:$0xff]
      %v379 = vld [vmem:[%s3 + $0x8] sm:$0xff]
      %v380 = vld [vmem:[%s3 + $0x10] sm:$0xff]
      %v381 = vld [vmem:[%s3 + $0x18] sm:$0xff]
      %v382 = vld [vmem:[%s3 + $0x20] sm:$0xff]
      %v383 = vld [vmem:[%s3 + $0x28] sm:$0xff]
      %v384 = vld [vmem:[%s3 + $0x30] sm:$0xff]
      %v385 = vld [vmem:[%s3 + $0x38] sm:$0xff]
      %386 = vmatprep.subr.mxu0 0.0
      %387 = vmatpush1.msra.mxu0 %v378
      %388 = vmatprep.subr.mxu0 0.0
      %389 = vmatpush1.msra.mxu0 %v379
      %390 = vmatprep.subr.mxu0 0.0
      %391 = vmatpush1.msra.mxu0 %v380
      %392 = vmatprep.subr.mxu0 0.0
      %393 = vmatpush1.msra.mxu0 %v381
      %394 = vmatprep.subr.mxu0 0.0
      %395 = vmatpush1.msra.mxu0 %v382
      %396 = vmatprep.subr.mxu0 0.0
      %397 = vmatpush1.msra.mxu0 %v383
      %398 = vmatprep.subr.mxu0 0.0
      %399 = vmatpush1.msra.mxu0 %v384
      %400 = vmatprep.subr.mxu0 0.0
      %401 = vmatpush1.msra.mxu0 %v385
      %402 = vmatprep.subr.mxu0 0.0
      %403 = vmatpush1.msra.mxu0 0.0
      %404 = vmatprep.subr.mxu0 0.0
      %405 = vmatpush1.msra.mxu0 0.0
      %406 = vmatprep.subr.mxu0 0.0
      %407 = vmatpush1.msra.mxu0 0.0
      %408 = vmatprep.subr.mxu0 0.0
      %409 = vmatpush1.msra.mxu0 0.0
      %410 = vmatprep.subr.mxu0 0.0
      %411 = vmatpush1.msra.mxu0 0.0
      %412 = vmatprep.subr.mxu0 0.0
      %413 = vmatpush1.msra.mxu0 0.0
      %414 = vmatprep.subr.mxu0 0.0
      %415 = vmatpush1.msra.mxu0 0.0
      %416 = vmatprep.subr.mxu0 0.0
      %417 = vmatpush1.msra.mxu0 0.0
      %418 = vmatprep.subr.mxu0 0.0
      %419 = vmatpush1.msra.mxu0 0.0
      %420 = vmatprep.subr.mxu0 0.0
      %421 = vmatpush1.msra.mxu0 0.0
      %422 = vmatprep.subr.mxu0 0.0
      %423 = vmatpush1.msra.mxu0 0.0
      %424 = vmatprep.subr.mxu0 0.0
      %425 = vmatpush1.msra.mxu0 0.0
      %426 = vmatprep.subr.mxu0 0.0
      %427 = vmatpush1.msra.mxu0 0.0
      %428 = vmatprep.subr.mxu0 0.0
      %429 = vmatpush1.msra.mxu0 0.0
      %430 = vmatprep.subr.mxu0 0.0
      %431 = vmatpush1.msra.mxu0 0.0
      %432 = vmatprep.subr.mxu0 0.0
      %433 = vmatpush1.msra.mxu0 0.0
      %434 = vmatprep.subr.mxu0 0.0
      %435 = vmatpush1.msra.mxu0 0.0
      %436 = vmatprep.subr.mxu0 0.0
      %437 = vmatpush1.msra.mxu0 0.0
      %438 = vmatprep.subr.mxu0 0.0
      %439 = vmatpush1.msra.mxu0 0.0
      %440 = vmatprep.subr.mxu0 0.0
      %441 = vmatpush1.msra.mxu0 0.0
      %442 = vmatprep.subr.mxu0 0.0
      %443 = vmatpush1.msra.mxu0 0.0
      %444 = vmatprep.subr.mxu0 0.0
      %445 = vmatpush1.msra.mxu0 0.0
      %446 = vmatprep.subr.mxu0 0.0
      %447 = vmatpush1.msra.mxu0 0.0
      %448 = vmatprep.subr.mxu0 0.0
      %449 = vmatpush1.msra.mxu0 0.0
      %450 = vmatprep.mubr.f32.mxu0 0.0
      %451 = vmatmul.mubr.f32.gmra.mrb[0].mxu0 %v298
      %v452 = vpop.f32.mrb[0].mxu0
      %v453 = vadd.f32 0.0, %v452
      %v454 = vpop.f32.mrb[0].mxu0
      %455 = vmatprep.mubr.f32.mxu0 0.0
      %456 = vmatmul.mubr.f32.gmra.mrb[0].mxu0 %v301
      %v457 = vpop.f32.mrb[0].mxu0
      %v458 = vadd.f32 0.0, %v457
      %v459 = vpop.f32.mrb[0].mxu0
      %460 = vdwg.mxu0
      %s461 = scalar_lea.vmem %s3, 64
      %v462 = vld [vmem:[%s461] sm:$0xff]
      %v463 = vld [vmem:[%s461 + $0x8] sm:$0xff]
      %v464 = vld [vmem:[%s461 + $0x10] sm:$0xff]
      %v465 = vld [vmem:[%s461 + $0x18] sm:$0xff]
      %v466 = vld [vmem:[%s461 + $0x20] sm:$0xff]
      %v467 = vld [vmem:[%s461 + $0x28] sm:$0xff]
      %v468 = vld [vmem:[%s461 + $0x30] sm:$0xff]
      %v469 = vld [vmem:[%s461 + $0x38] sm:$0xff]
      %470 = vmatprep.subr.mxu0 0.0
      %471 = vmatpush1.msra.mxu0 %v462
      %472 = vmatprep.subr.mxu0 0.0
      %473 = vmatpush1.msra.mxu0 %v463
      %474 = vmatprep.subr.mxu0 0.0
      %475 = vmatpush1.msra.mxu0 %v464
      %476 = vmatprep.subr.mxu0 0.0
      %477 = vmatpush1.msra.mxu0 %v465
      %478 = vmatprep.subr.mxu0 0.0
      %479 = vmatpush1.msra.mxu0 %v466
      %480 = vmatprep.subr.mxu0 0.0
      %481 = vmatpush1.msra.mxu0 %v467
      %482 = vmatprep.subr.mxu0 0.0
      %483 = vmatpush1.msra.mxu0 %v468
      %484 = vmatprep.subr.mxu0 0.0
      %485 = vmatpush1.msra.mxu0 %v469
      %486 = vmatprep.subr.mxu0 0.0
      %487 = vmatpush1.msra.mxu0 0.0
      %488 = vmatprep.subr.mxu0 0.0
      %489 = vmatpush1.msra.mxu0 0.0
      %490 = vmatprep.subr.mxu0 0.0
      %491 = vmatpush1.msra.mxu0 0.0
      %492 = vmatprep.subr.mxu0 0.0
      %493 = vmatpush1.msra.mxu0 0.0
      %494 = vmatprep.subr.mxu0 0.0
      %495 = vmatpush1.msra.mxu0 0.0
      %496 = vmatprep.subr.mxu0 0.0
      %497 = vmatpush1.msra.mxu0 0.0
      %498 = vmatprep.subr.mxu0 0.0
      %499 = vmatpush1.msra.mxu0 0.0
      %500 = vmatprep.subr.mxu0 0.0
      %501 = vmatpush1.msra.mxu0 0.0
      %502 = vmatprep.subr.mxu0 0.0
      %503 = vmatpush1.msra.mxu0 0.0
      %504 = vmatprep.subr.mxu0 0.0
      %505 = vmatpush1.msra.mxu0 0.0
      %506 = vmatprep.subr.mxu0 0.0
      %507 = vmatpush1.msra.mxu0 0.0
      %508 = vmatprep.subr.mxu0 0.0
      %509 = vmatpush1.msra.mxu0 0.0
      %510 = vmatprep.subr.mxu0 0.0
      %511 = vmatpush1.msra.mxu0 0.0
      %512 = vmatprep.subr.mxu0 0.0
      %513 = vmatpush1.msra.mxu0 0.0
      %514 = vmatprep.subr.mxu0 0.0
      %515 = vmatpush1.msra.mxu0 0.0
      %516 = vmatprep.subr.mxu0 0.0
      %517 = vmatpush1.msra.mxu0 0.0
      %518 = vmatprep.subr.mxu0 0.0
      %519 = vmatpush1.msra.mxu0 0.0
      %520 = vmatprep.subr.mxu0 0.0
      %521 = vmatpush1.msra.mxu0 0.0
      %522 = vmatprep.subr.mxu0 0.0
      %523 = vmatpush1.msra.mxu0 0.0
      %524 = vmatprep.subr.mxu0 0.0
      %525 = vmatpush1.msra.mxu0 0.0
      %526 = vmatprep.subr.mxu0 0.0
      %527 = vmatpush1.msra.mxu0 0.0
      %528 = vmatprep.subr.mxu0 0.0
      %529 = vmatpush1.msra.mxu0 0.0
      %530 = vmatprep.subr.mxu0 0.0
      %531 = vmatpush1.msra.mxu0 0.0
      %532 = vmatprep.subr.mxu0 0.0
      %533 = vmatpush1.msra.mxu0 0.0
      %534 = vmatprep.mubr.f32.mxu0 0.0
      %535 = vmatmul.mubr.f32.gmra.mrb[0].mxu0 %v298
      %v536 = vpop.f32.mrb[0].mxu0
      %v537 = vadd.f32 0.0, %v536
      %v538 = vpop.f32.mrb[0].mxu0
      %539 = vmatprep.mubr.f32.mxu0 0.0
      %540 = vmatmul.mubr.f32.gmra.mrb[0].mxu0 %v301
      %v541 = vpop.f32.mrb[0].mxu0
      %v542 = vadd.f32 0.0, %v541
      %v543 = vpop.f32.mrb[0].mxu0
      %544 = vdwg.mxu0
      %s545 = scalar_lea.vmem %s3, 128
      %v546 = vld [vmem:[%s545] sm:$0xff]
      %v547 = vld [vmem:[%s545 + $0x8] sm:$0xff]
      %v548 = vld [vmem:[%s545 + $0x10] sm:$0xff]
      %v549 = vld [vmem:[%s545 + $0x18] sm:$0xff]
      %v550 = vld [vmem:[%s545 + $0x20] sm:$0xff]
      %v551 = vld [vmem:[%s545 + $0x28] sm:$0xff]
      %v552 = vld [vmem:[%s545 + $0x30] sm:$0xff]
      %v553 = vld [vmem:[%s545 + $0x38] sm:$0xff]
      %554 = vmatprep.subr.mxu0 0.0
      %555 = vmatpush1.msra.mxu0 %v546
      %556 = vmatprep.subr.mxu0 0.0
      %557 = vmatpush1.msra.mxu0 %v547
      %558 = vmatprep.subr.mxu0 0.0
      %559 = vmatpush1.msra.mxu0 %v548
      %560 = vmatprep.subr.mxu0 0.0
      %561 = vmatpush1.msra.mxu0 %v549
      %562 = vmatprep.subr.mxu0 0.0
      %563 = vmatpush1.msra.mxu0 %v550
      %564 = vmatprep.subr.mxu0 0.0
      %565 = vmatpush1.msra.mxu0 %v551
      %566 = vmatprep.subr.mxu0 0.0
      %567 = vmatpush1.msra.mxu0 %v552
      %568 = vmatprep.subr.mxu0 0.0
      %569 = vmatpush1.msra.mxu0 %v553
      %570 = vmatprep.subr.mxu0 0.0
      %571 = vmatpush1.msra.mxu0 0.0
      %572 = vmatprep.subr.mxu0 0.0
      %573 = vmatpush1.msra.mxu0 0.0
      %574 = vmatprep.subr.mxu0 0.0
      %575 = vmatpush1.msra.mxu0 0.0
      %576 = vmatprep.subr.mxu0 0.0
      %577 = vmatpush1.msra.mxu0 0.0
      %578 = vmatprep.subr.mxu0 0.0
      %579 = vmatpush1.msra.mxu0 0.0
      %580 = vmatprep.subr.mxu0 0.0
      %581 = vmatpush1.msra.mxu0 0.0
      %582 = vmatprep.subr.mxu0 0.0
      %583 = vmatpush1.msra.mxu0 0.0
      %584 = vmatprep.subr.mxu0 0.0
      %585 = vmatpush1.msra.mxu0 0.0
      %586 = vmatprep.subr.mxu0 0.0
      %587 = vmatpush1.msra.mxu0 0.0
      %588 = vmatprep.subr.mxu0 0.0
      %589 = vmatpush1.msra.mxu0 0.0
      %590 = vmatprep.subr.mxu0 0.0
      %591 = vmatpush1.msra.mxu0 0.0
      %592 = vmatprep.subr.mxu0 0.0
      %593 = vmatpush1.msra.mxu0 0.0
      %594 = vmatprep.subr.mxu0 0.0
      %595 = vmatpush1.msra.mxu0 0.0
      %596 = vmatprep.subr.mxu0 0.0
      %597 = vmatpush1.msra.mxu0 0.0
      %598 = vmatprep.subr.mxu0 0.0
      %599 = vmatpush1.msra.mxu0 0.0
      %600 = vmatprep.subr.mxu0 0.0
      %601 = vmatpush1.msra.mxu0 0.0
      %602 = vmatprep.subr.mxu0 0.0
      %603 = vmatpush1.msra.mxu0 0.0
      %604 = vmatprep.subr.mxu0 0.0
      %605 = vmatpush1.msra.mxu0 0.0
      %606 = vmatprep.subr.mxu0 0.0
      %607 = vmatpush1.msra.mxu0 0.0
      %608 = vmatprep.subr.mxu0 0.0
      %609 = vmatpush1.msra.mxu0 0.0
      %610 = vmatprep.subr.mxu0 0.0
      %611 = vmatpush1.msra.mxu0 0.0
      %612 = vmatprep.subr.mxu0 0.0
      %613 = vmatpush1.msra.mxu0 0.0
      %614 = vmatprep.subr.mxu0 0.0
      %615 = vmatpush1.msra.mxu0 0.0
      %616 = vmatprep.subr.mxu0 0.0
      %617 = vmatpush1.msra.mxu0 0.0
      %618 = vmatprep.mubr.f32.mxu0 0.0
      %619 = vmatmul.mubr.f32.gmra.mrb[0].mxu0 %v298
      %v620 = vpop.f32.mrb[0].mxu0
      %v621 = vadd.f32 0.0, %v620
      %v622 = vpop.f32.mrb[0].mxu0
      %623 = vmatprep.mubr.f32.mxu0 0.0
      %624 = vmatmul.mubr.f32.gmra.mrb[0].mxu0 %v301
      %v625 = vpop.f32.mrb[0].mxu0
      %v626 = vadd.f32 0.0, %v625
      %v627 = vpop.f32.mrb[0].mxu0
      %628 = vdwg.mxu0
      %vm631 = vcmask 1040384
      %v632 = vrot.slane %v453, 7
      %v633 = vrot.slane %v458, 7
      %v634 = vsel %vm631, %v632, %v633
      %v637 = vsel %vm631, 0.0, %v632
      %v638 = vlaneseq
      %v639 = vshrl.u32 %v638, 7
      %v640 = vadd.s32 %v639, 8
      %vm641 = vcmp.lt.s32.totalorder %v639, 0
      %v642 = vsub.s32 0, %v639
      %v643 = vsel %vm641, %v642, %v639
      %v644 = vshrl.u32 %v643, 4
      %v645 = vand.u32 %v643, 15
      %v646 = vsub.s32 0, %v645
      %v647 = vsel %vm641, %v646, %v645
      %vm648 = vcmp.lt.s32.totalorder %v640, 0
      %v649 = vsub.s32 0, %v640
      %v650 = vsel %vm648, %v649, %v640
      %v651 = vshrl.u32 %v650, 4
      %v652 = vand.u32 %v650, 15
      %v653 = vsub.s32 0, %v652
      %v654 = vsel %vm648, %v653, %v652
      %vm655 = vcmp.ne.s32.totalorder %v647, 0
      %vm656 = vcmp.ne.s32.totalorder %v654, 0
      %vm657 = vcmp.lt.s32.totalorder %v647, 0
      %vm658 = vcmp.lt.s32.totalorder %v654, 0
      %vm659 = vmand %vm657, %vm655
      %vm660 = vmand %vm658, %vm656
      %v661 = vadd.s32 %v647, 16
      %v662 = vadd.s32 %v654, 16
      %v663 = vsel %vm659, %v661, %v647
      %v664 = vsel %vm660, %v662, %v654
      %vm665 = vcmp.eq.s32.totalorder %v663, 0
      %vm666 = vcmp.eq.s32.totalorder %v664, 0
      %v667 = vsel %vm665, 0.0, %v637
      %v668 = vsel %vm666, 0.0, %v634
      %v669 = vadd.f32 %v667, %v537
      %v670 = vadd.f32 %v668, %v542
      %vm673 = vcmask 1046528
      %v674 = vrot.slane %v621, 1
      %v675 = vrot.slane %v626, 1
      %v676 = vsel %vm673, %v674, %v675
      %v679 = vsel %vm673, %v675, 0.0
      %vm680 = vcmp.eq.s32.totalorder %v663, 15
      %vm681 = vcmp.eq.s32.totalorder %v664, 15
      %v682 = vsel %vm680, 0.0, %v676
      %v683 = vsel %vm681, 0.0, %v679
      %v684 = vadd.f32 %v669, %v682
      %v685 = vadd.f32 %v670, %v683
      %v686 = vld [vmem:[%s4] sm:$0x1]
      %v688 = vlaneseq
      %v689 = vshrl.u32 %v688, 7
      %v690 = vsub.s32 0, %v689
      %v691 = vrot.slane %v686, %v690
      %v693 = vadd.f32 %v684, %v691
      %v694 = vadd.f32 %v685, %v691
      %v695 = vmax.f32 %v693, 0.0
      %v696 = vmax.f32 %v694, 0.0
      %v697 = vld [vmem:[%s5] sm:$0xff]
      %v698 = vld [vmem:[%s5 + $0x8] sm:$0xff]
      %v699 = vld [vmem:[%s5 + $0x10] sm:$0xff]
      %v700 = vld [vmem:[%s5 + $0x18] sm:$0xff]
      %v701 = vld [vmem:[%s5 + $0x20] sm:$0xff]
      %v702 = vld [vmem:[%s5 + $0x28] sm:$0xff]
      %v703 = vld [vmem:[%s5 + $0x30] sm:$0xff]
      %v704 = vld [vmem:[%s5 + $0x38] sm:$0xff]
      %v705 = vld [vmem:[%s5 + $0x40] sm:$0xff]
      %v706 = vld [vmem:[%s5 + $0x48] sm:$0xff]
      %v707 = vld [vmem:[%s5 + $0x50] sm:$0xff]
      %v708 = vld [vmem:[%s5 + $0x58] sm:$0xff]
      %v709 = vld [vmem:[%s5 + $0x60] sm:$0xff]
      %v710 = vld [vmem:[%s5 + $0x68] sm:$0xff]
      %v711 = vld [vmem:[%s5 + $0x70] sm:$0xff]
      %v712 = vld [vmem:[%s5 + $0x78] sm:$0xff]
      %713 = vmatprep.subr.mxu0 0.0
      %714 = vmatpush1.msra.mxu0 %v697
      %715 = vmatprep.subr.mxu0 0.0
      %716 = vmatpush1.msra.mxu0 %v698
      %717 = vmatprep.subr.mxu0 0.0
      %718 = vmatpush1.msra.mxu0 %v699
      %719 = vmatprep.subr.mxu0 0.0
      %720 = vmatpush1.msra.mxu0 %v700
      %721 = vmatprep.subr.mxu0 0.0
      %722 = vmatpush1.msra.mxu0 %v701
      %723 = vmatprep.subr.mxu0 0.0
      %724 = vmatpush1.msra.mxu0 %v702
      %725 = vmatprep.subr.mxu0 0.0
      %726 = vmatpush1.msra.mxu0 %v703
      %727 = vmatprep.subr.mxu0 0.0
      %728 = vmatpush1.msra.mxu0 %v704
      %729 = vmatprep.subr.mxu0 0.0
      %730 = vmatpush1.msra.mxu0 %v705
      %731 = vmatprep.subr.mxu0 0.0
      %732 = vmatpush1.msra.mxu0 %v706
      %733 = vmatprep.subr.mxu0 0.0
      %734 = vmatpush1.msra.mxu0 %v707
      %735 = vmatprep.subr.mxu0 0.0
      %736 = vmatpush1.msra.mxu0 %v708
      %737 = vmatprep.subr.mxu0 0.0
      %738 = vmatpush1.msra.mxu0 %v709
      %739 = vmatprep.subr.mxu0 0.0
      %740 = vmatpush1.msra.mxu0 %v710
      %741 = vmatprep.subr.mxu0 0.0
      %742 = vmatpush1.msra.mxu0 %v711
      %743 = vmatprep.subr.mxu0 0.0
      %744 = vmatpush1.msra.mxu0 %v712
      %745 = vmatprep.subr.mxu0 0.0
      %746 = vmatpush1.msra.mxu0 0.0
      %747 = vmatprep.subr.mxu0 0.0
      %748 = vmatpush1.msra.mxu0 0.0
      %749 = vmatprep.subr.mxu0 0.0
      %750 = vmatpush1.msra.mxu0 0.0
      %751 = vmatprep.subr.mxu0 0.0
      %752 = vmatpush1.msra.mxu0 0.0
      %753 = vmatprep.subr.mxu0 0.0
      %754 = vmatpush1.msra.mxu0 0.0
      %755 = vmatprep.subr.mxu0 0.0
      %756 = vmatpush1.msra.mxu0 0.0
      %757 = vmatprep.subr.mxu0 0.0
      %758 = vmatpush1.msra.mxu0 0.0
      %759 = vmatprep.subr.mxu0 0.0
      %760 = vmatpush1.msra.mxu0 0.0
      %761 = vmatprep.subr.mxu0 0.0
      %762 = vmatpush1.msra.mxu0 0.0
      %763 = vmatprep.subr.mxu0 0.0
      %764 = vmatpush1.msra.mxu0 0.0
      %765 = vmatprep.subr.mxu0 0.0
      %766 = vmatpush1.msra.mxu0 0.0
      %767 = vmatprep.subr.mxu0 0.0
      %768 = vmatpush1.msra.mxu0 0.0
      %769 = vmatprep.subr.mxu0 0.0
      %770 = vmatpush1.msra.mxu0 0.0
      %771 = vmatprep.subr.mxu0 0.0
      %772 = vmatpush1.msra.mxu0 0.0
      %773 = vmatprep.subr.mxu0 0.0
      %774 = vmatpush1.msra.mxu0 0.0
      %775 = vmatprep.subr.mxu0 0.0
      %776 = vmatpush1.msra.mxu0 0.0
      %777 = vmatprep.mubr.f32.mxu0 0.0
      %778 = vmatmul.mubr.f32.gmra.mrb[0].mxu0 %v695
      %v779 = vpop.f32.mrb[0].mxu0
      %v780 = vadd.f32 0.0, %v779
      %v781 = vpop.f32.mrb[0].mxu0
      %782 = vmatprep.mubr.f32.mxu0 0.0
      %783 = vmatmul.mubr.f32.gmra.mrb[0].mxu0 %v696
      %v784 = vpop.f32.mrb[0].mxu0
      %v785 = vadd.f32 0.0, %v784
      %v786 = vpop.f32.mrb[0].mxu0
      %787 = vdwg.mxu0
      %s788 = scalar_lea.vmem %s5, 128
      %v789 = vld [vmem:[%s788] sm:$0xff]
      %v790 = vld [vmem:[%s788 + $0x8] sm:$0xff]
      %v791 = vld [vmem:[%s788 + $0x10] sm:$0xff]
      %v792 = vld [vmem:[%s788 + $0x18] sm:$0xff]
      %v793 = vld [vmem:[%s788 + $0x20] sm:$0xff]
      %v794 = vld [vmem:[%s788 + $0x28] sm:$0xff]
      %v795 = vld [vmem:[%s788 + $0x30] sm:$0xff]
      %v796 = vld [vmem:[%s788 + $0x38] sm:$0xff]
      %v797 = vld [vmem:[%s788 + $0x40] sm:$0xff]
      %v798 = vld [vmem:[%s788 + $0x48] sm:$0xff]
      %v799 = vld [vmem:[%s788 + $0x50] sm:$0xff]
      %v800 = vld [vmem:[%s788 + $0x58] sm:$0xff]
      %v801 = vld [vmem:[%s788 + $0x60] sm:$0xff]
      %v802 = vld [vmem:[%s788 + $0x68] sm:$0xff]
      %v803 = vld [vmem:[%s788 + $0x70] sm:$0xff]
      %v804 = vld [vmem:[%s788 + $0x78] sm:$0xff]
      %805 = vmatprep.subr.mxu0 0.0
      %806 = vmatpush1.msra.mxu0 %v789
      %807 = vmatprep.subr.mxu0 0.0
      %808 = vmatpush1.msra.mxu0 %v790
      %809 = vmatprep.subr.mxu0 0.0
      %810 = vmatpush1.msra.mxu0 %v791
      %811 = vmatprep.subr.mxu0 0.0
      %812 = vmatpush1.msra.mxu0 %v792
      %813 = vmatprep.subr.mxu0 0.0
      %814 = vmatpush1.msra.mxu0 %v793
      %815 = vmatprep.subr.mxu0 0.0
      %816 = vmatpush1.msra.mxu0 %v794
      %817 = vmatprep.subr.mxu0 0.0
      %818 = vmatpush1.msra.mxu0 %v795
      %819 = vmatprep.subr.mxu0 0.0
      %820 = vmatpush1.msra.mxu0 %v796
      %821 = vmatprep.subr.mxu0 0.0
      %822 = vmatpush1.msra.mxu0 %v797
      %823 = vmatprep.subr.mxu0 0.0
      %824 = vmatpush1.msra.mxu0 %v798
      %825 = vmatprep.subr.mxu0 0.0
      %826 = vmatpush1.msra.mxu0 %v799
      %827 = vmatprep.subr.mxu0 0.0
      %828 = vmatpush1.msra.mxu0 %v800
      %829 = vmatprep.subr.mxu0 0.0
      %830 = vmatpush1.msra.mxu0 %v801
      %831 = vmatprep.subr.mxu0 0.0
      %832 = vmatpush1.msra.mxu0 %v802
      %833 = vmatprep.subr.mxu0 0.0
      %834 = vmatpush1.msra.mxu0 %v803
      %835 = vmatprep.subr.mxu0 0.0
      %836 = vmatpush1.msra.mxu0 %v804
      %837 = vmatprep.subr.mxu0 0.0
      %838 = vmatpush1.msra.mxu0 0.0
      %839 = vmatprep.subr.mxu0 0.0
      %840 = vmatpush1.msra.mxu0 0.0
      %841 = vmatprep.subr.mxu0 0.0
      %842 = vmatpush1.msra.mxu0 0.0
      %843 = vmatprep.subr.mxu0 0.0
      %844 = vmatpush1.msra.mxu0 0.0
      %845 = vmatprep.subr.mxu0 0.0
      %846 = vmatpush1.msra.mxu0 0.0
      %847 = vmatprep.subr.mxu0 0.0
      %848 = vmatpush1.msra.mxu0 0.0
      %849 = vmatprep.subr.mxu0 0.0
      %850 = vmatpush1.msra.mxu0 0.0
      %851 = vmatprep.subr.mxu0 0.0
      %852 = vmatpush1.msra.mxu0 0.0
      %853 = vmatprep.subr.mxu0 0.0
      %854 = vmatpush1.msra.mxu0 0.0
      %855 = vmatprep.subr.mxu0 0.0
      %856 = vmatpush1.msra.mxu0 0.0
      %857 = vmatprep.subr.mxu0 0.0
      %858 = vmatpush1.msra.mxu0 0.0
      %859 = vmatprep.subr.mxu0 0.0
      %860 = vmatpush1.msra.mxu0 0.0
      %861 = vmatprep.subr.mxu0 0.0
      %862 = vmatpush1.msra.mxu0 0.0
      %863 = vmatprep.subr.mxu0 0.0
      %864 = vmatpush1.msra.mxu0 0.0
      %865 = vmatprep.subr.mxu0 0.0
      %866 = vmatpush1.msra.mxu0 0.0
      %867 = vmatprep.subr.mxu0 0.0
      %868 = vmatpush1.msra.mxu0 0.0
      %869 = vmatprep.mubr.f32.mxu0 0.0
      %870 = vmatmul.mubr.f32.gmra.mrb[0].mxu0 %v695
      %v871 = vpop.f32.mrb[0].mxu0
      %v872 = vadd.f32 0.0, %v871
      %v873 = vpop.f32.mrb[0].mxu0
      %874 = vmatprep.mubr.f32.mxu0 0.0
      %875 = vmatmul.mubr.f32.gmra.mrb[0].mxu0 %v696
      %v876 = vpop.f32.mrb[0].mxu0
      %v877 = vadd.f32 0.0, %v876
      %v878 = vpop.f32.mrb[0].mxu0
      %879 = vdwg.mxu0
      %s880 = scalar_lea.vmem %s5, 256
      %v881 = vld [vmem:[%s880] sm:$0xff]
      %v882 = vld [vmem:[%s880 + $0x8] sm:$0xff]
      %v883 = vld [vmem:[%s880 + $0x10] sm:$0xff]
      %v884 = vld [vmem:[%s880 + $0x18] sm:$0xff]
      %v885 = vld [vmem:[%s880 + $0x20] sm:$0xff]
      %v886 = vld [vmem:[%s880 + $0x28] sm:$0xff]
      %v887 = vld [vmem:[%s880 + $0x30] sm:$0xff]
      %v888 = vld [vmem:[%s880 + $0x38] sm:$0xff]
      %v889 = vld [vmem:[%s880 + $0x40] sm:$0xff]
      %v890 = vld [vmem:[%s880 + $0x48] sm:$0xff]
      %v891 = vld [vmem:[%s880 + $0x50] sm:$0xff]
      %v892 = vld [vmem:[%s880 + $0x58] sm:$0xff]
      %v893 = vld [vmem:[%s880 + $0x60] sm:$0xff]
      %v894 = vld [vmem:[%s880 + $0x68] sm:$0xff]
      %v895 = vld [vmem:[%s880 + $0x70] sm:$0xff]
      %v896 = vld [vmem:[%s880 + $0x78] sm:$0xff]
      %897 = vmatprep.subr.mxu0 0.0
      %898 = vmatpush1.msra.mxu0 %v881
      %899 = vmatprep.subr.mxu0 0.0
      %900 = vmatpush1.msra.mxu0 %v882
      %901 = vmatprep.subr.mxu0 0.0
      %902 = vmatpush1.msra.mxu0 %v883
      %903 = vmatprep.subr.mxu0 0.0
      %904 = vmatpush1.msra.mxu0 %v884
      %905 = vmatprep.subr.mxu0 0.0
      %906 = vmatpush1.msra.mxu0 %v885
      %907 = vmatprep.subr.mxu0 0.0
      %908 = vmatpush1.msra.mxu0 %v886
      %909 = vmatprep.subr.mxu0 0.0
      %910 = vmatpush1.msra.mxu0 %v887
      %911 = vmatprep.subr.mxu0 0.0
      %912 = vmatpush1.msra.mxu0 %v888
      %913 = vmatprep.subr.mxu0 0.0
      %914 = vmatpush1.msra.mxu0 %v889
      %915 = vmatprep.subr.mxu0 0.0
      %916 = vmatpush1.msra.mxu0 %v890
      %917 = vmatprep.subr.mxu0 0.0
      %918 = vmatpush1.msra.mxu0 %v891
      %919 = vmatprep.subr.mxu0 0.0
      %920 = vmatpush1.msra.mxu0 %v892
      %921 = vmatprep.subr.mxu0 0.0
      %922 = vmatpush1.msra.mxu0 %v893
      %923 = vmatprep.subr.mxu0 0.0
      %924 = vmatpush1.msra.mxu0 %v894
      %925 = vmatprep.subr.mxu0 0.0
      %926 = vmatpush1.msra.mxu0 %v895
      %927 = vmatprep.subr.mxu0 0.0
      %928 = vmatpush1.msra.mxu0 %v896
      %929 = vmatprep.subr.mxu0 0.0
      %930 = vmatpush1.msra.mxu0 0.0
      %931 = vmatprep.subr.mxu0 0.0
      %932 = vmatpush1.msra.mxu0 0.0
      %933 = vmatprep.subr.mxu0 0.0
      %934 = vmatpush1.msra.mxu0 0.0
      %935 = vmatprep.subr.mxu0 0.0
      %936 = vmatpush1.msra.mxu0 0.0
      %937 = vmatprep.subr.mxu0 0.0
      %938 = vmatpush1.msra.mxu0 0.0
      %939 = vmatprep.subr.mxu0 0.0
      %940 = vmatpush1.msra.mxu0 0.0
      %941 = vmatprep.subr.mxu0 0.0
      %942 = vmatpush1.msra.mxu0 0.0
      %943 = vmatprep.subr.mxu0 0.0
      %944 = vmatpush1.msra.mxu0 0.0
      %945 = vmatprep.subr.mxu0 0.0
      %946 = vmatpush1.msra.mxu0 0.0
      %947 = vmatprep.subr.mxu0 0.0
      %948 = vmatpush1.msra.mxu0 0.0
      %949 = vmatprep.subr.mxu0 0.0
      %950 = vmatpush1.msra.mxu0 0.0
      %951 = vmatprep.subr.mxu0 0.0
      %952 = vmatpush1.msra.mxu0 0.0
      %953 = vmatprep.subr.mxu0 0.0
      %954 = vmatpush1.msra.mxu0 0.0
      %955 = vmatprep.subr.mxu0 0.0
      %956 = vmatpush1.msra.mxu0 0.0
      %957 = vmatprep.subr.mxu0 0.0
      %958 = vmatpush1.msra.mxu0 0.0
      %959 = vmatprep.subr.mxu0 0.0
      %960 = vmatpush1.msra.mxu0 0.0
      %961 = vmatprep.mubr.f32.mxu0 0.0
      %962 = vmatmul.mubr.f32.gmra.mrb[0].mxu0 %v695
      %v963 = vpop.f32.mrb[0].mxu0
      %v964 = vadd.f32 0.0, %v963
      %v965 = vpop.f32.mrb[0].mxu0
      %966 = vmatprep.mubr.f32.mxu0 0.0
      %967 = vmatmul.mubr.f32.gmra.mrb[0].mxu0 %v696
      %v968 = vpop.f32.mrb[0].mxu0
      %v969 = vadd.f32 0.0, %v968
      %v970 = vpop.f32.mrb[0].mxu0
      %971 = vdwg.mxu0
      %v974 = vrot.slane %v780, 7
      %v975 = vrot.slane %v785, 7
      %v976 = vsel %vm631, %v974, %v975
      %v979 = vsel %vm631, 0.0, %v974
      %v980 = vsel %vm665, 0.0, %v979
      %v981 = vsel %vm666, 0.0, %v976
      %v982 = vadd.f32 %v980, %v872
      %v983 = vadd.f32 %v981, %v877
      %v986 = vrot.slane %v964, 1
      %v987 = vrot.slane %v969, 1
      %v988 = vsel %vm673, %v986, %v987
      %v991 = vsel %vm673, %v987, 0.0
      %v992 = vsel %vm680, 0.0, %v988
      %v993 = vsel %vm681, 0.0, %v991
      %v994 = vadd.f32 %v982, %v992
      %v995 = vadd.f32 %v983, %v993
      %v996 = vld [vmem:[%s6] sm:$0x1]
      %v998 = vlaneseq
      %v999 = vshrl.u32 %v998, 7
      %v1000 = vsub.s32 0, %v999
      %v1001 = vrot.slane %v996, %v1000
      %v1003 = vadd.f32 %v994, %v1001
      %v1004 = vadd.f32 %v995, %v1001
      %v1005 = vmax.f32 %v1003, 0.0
      %v1006 = vmax.f32 %v1004, 0.0
      %v1007 = vadd.f32 %v1005, %v370
      %v1008 = vadd.f32 %v1006, %v375
      %v1009 = vmax.f32 %v1007, 0.0
      %v1010 = vmax.f32 %v1008, 0.0
      %1011 = vst [vmem:[%s278] sm:$0xff] %v1009
      %1012 = vst [vmem:[%s278 + $0x8] sm:$0xff] %v1010
      %p1013 = scmp.lt.s32.totalorder %s18, 1
      %s1014 = scalar_select %p1013, %s18, 1
      %s1015 = smul.addr %s1014, 2
      %s1016 = smul.addr %s1015, 8
      %s1017 = scalar_lea.vmem %s7, %s1016
      // Predicated region
      $region49: #{resblock_d3_forward.1} parent=47 // pred_check
        %p1018 = pneg %p188
      $region50: #{resblock_d3_forward.1} parent=47 // pred_check_branch
        %1020 = sbr.rel (%p1018) target = $region52
      $region51: #{resblock_d3_forward.1} parent=47 // pred_region
        _
      $region52: #{resblock_d3_forward.1} parent=47 // pred_fallthru
        _
    $region48: #{resblock_d3_forward.1} parent=5 // pred_fallthru
      _
    %p1021 = scmp.le.s32.totalorder 2, %s13
    // Predicated region
    $region53: #{resblock_d3_forward.1} parent=5 // pred_check
      %p1022 = pneg %p1021
    $region54: #{resblock_d3_forward.1} parent=5 // pred_check_branch
      %1024 = sbr.rel (%p1022) target = $region56
    $region55: #{resblock_d3_forward.1} parent=5 // pred_region
      %s1025 = ssub.s32 %s13, 2
      // Predicated region
      $region57: #{resblock_d3_forward.1} parent=55 // pred_check
        %p1026 = pneg %p194
      $region58: #{resblock_d3_forward.1} parent=55 // pred_check_branch
        %1028 = sbr.rel (%p1026) target = $region60
      $region59: #{resblock_d3_forward.1} parent=55 // pred_region
        %p1029 = scmp.lt.s32.totalorder %s19, 1
        %s1030 = scalar_select %p1029, %s19, 1
        %s1031 = smul.addr %s1030, 2
        %s1032 = smul.addr %s1031, 8
        %s1033 = scalar_lea.vmem %s7, %s1032
      $region60: #{resblock_d3_forward.1} parent=55 // pred_fallthru
        _
    $region56: #{resblock_d3_forward.1} parent=5 // pred_fallthru
      _
  $region6: #{resblock_d3_forward.1} parent=0 // loop_footer
    %s17 = sadd.s32 1, %s13
  $region7: #{resblock_d3_forward.1} parent=0 // loop_footer_branch
    %12 = sbr.rel target = $region3
  $region8: #{resblock_d3_forward.1} parent=0 // loop_exit
    _

</llo_original>
